<compile_context>
chip_gen: v7x
topology: tpu7x:2x2x1
jax: 0.10.0
libtpu: 0.0.40
codegen_flags: <defaults>
</compile_context>

<pallas_src>
import jax
import jax.numpy as jnp
import numpy as np
from jax.experimental import pallas as pl
from jax.experimental.pallas import tpu as pltpu


def _round_up(x, m):
    return (x + m - 1) // m * m


# ----------------------------------------------------------------------------
# Pallas kernel: serial LSTM recurrence only (x@W already hoisted into wx).
# ----------------------------------------------------------------------------
def _qlstm_recurrent_kernel(wx_ref, u_ref, out_ref, h_scr, c_scr):
    @pl.when(pl.program_id(1) == 0)
    def _():
        # h_init / c_init are zeros (matches register_buffer h_init).
        h_scr[...] = jnp.zeros_like(h_scr)
        c_scr[...] = jnp.zeros_like(c_scr)

    h4p = h_scr.shape[-1]                       # lane-aligned (multiple of 128)
    u = u_ref[...]                              # (H4p, 4*H4p) bf16, resident

    def step(s, carry):
        h, c = carry
        # gates = wx_t + h @ U   (biases already folded into wx)
        gates = wx_ref[s] + jnp.dot(h.astype(u.dtype), u,
                                    preferred_element_type=jnp.float32)
        # Gate quarters are 128-lane aligned -> contiguous zero-cost slices.
        # One sigmoid over the i|f|o slab, one tanh for the candidate (EUP).
        ifo = jax.nn.sigmoid(gates[:, :3 * h4p])
        g_t = jnp.tanh(gates[:, 3 * h4p:])
        # TODO(synk): training-mode recurrent dropout masks not implemented
        # (eval mode: drop_mask_te == 1.0).
        c = ifo[:, :h4p] * g_t + ifo[:, h4p:2 * h4p] * c
        h = ifo[:, 2 * h4p:] * jnp.tanh(c)
        out_ref[s] = h.astype(out_ref.dtype)    # lane-dense, unmasked store
        return h, c

    h, c = jax.lax.fori_loop(0, wx_ref.shape[0], step,
                             (h_scr[...], c_scr[...]), unroll=True)
    h_scr[...] = h
    c_scr[...] = c


def qlstm_recurrence(wx, u_bf16, T, B, H4, *, tb=32, bb=8):
    """wx: (T, B, Gp) f32 (biases folded, gate quarters lane-padded).
    u_bf16: (H4p, Gp) bf16. Returns the hidden sequence (T, B, H4) f32."""
    H4p, Gp = u_bf16.shape
    tb = max(1, min(tb, T))
    Tp = _round_up(T, tb)
    Bp = _round_up(B, bb)
    if Tp != T or Bp != B:
        wx = jnp.pad(wx, ((0, Tp - T), (0, Bp - B), (0, 0)))

    out = pl.pallas_call(
        _qlstm_recurrent_kernel,
        out_shape=jax.ShapeDtypeStruct((Tp, Bp, H4p), jnp.float32),
        grid_spec=pltpu.PrefetchScalarGridSpec(
            num_scalar_prefetch=0,
            grid=(Bp // bb, Tp // tb),            # (batch blocks, time blocks)
            in_specs=[
                pl.BlockSpec((tb, bb, Gp), lambda b, t: (t, b, 0)),   # wx tile
                # U resident (constant block index -> DMA'd once, no re-fetch).
                # TODO(synk): for very large hidden sizes on v7x (64 MiB VMEM),
                # stream G-tiles of U from HBM (memory_space=pl.ANY + manual
                # double-buffered DMA) instead of keeping it fully resident.
                pl.BlockSpec((H4p, Gp), lambda b, t: (0, 0)),
            ],
            out_specs=pl.BlockSpec((tb, bb, H4p), lambda b, t: (t, b, 0)),
            scratch_shapes=[
                pltpu.VMEM((bb, H4p), jnp.float32),   # h state (across blocks)
                pltpu.VMEM((bb, H4p), jnp.float32),   # c state (across blocks)
            ],
        ),
        compiler_params=pltpu.CompilerParams(
            dimension_semantics=("parallel", "arbitrary"),
            vmem_limit_bytes=64 * 1024 * 1024,
        ),
    )(wx, u_bf16)

    if Tp == T and Bp == B and H4p == H4:
        return out
    return out[:T, :B, :H4]


# ----------------------------------------------------------------------------
# Parameter construction (deterministic, synthetic) -- plain JAX glue.
# ----------------------------------------------------------------------------
def _quat_dense_matrix(r, i, j, k):
    """Hamilton-product matrix used by QLinear: (in_q, out_q)*4 -> (4in, 4out)."""
    col_r = jnp.concatenate([r, -i, -j, -k], axis=0)
    col_i = jnp.concatenate([i, r, -k, j], axis=0)
    col_j = jnp.concatenate([j, k, r, -i], axis=0)
    col_k = jnp.concatenate([k, -j, i, r], axis=0)
    return jnp.concatenate([col_r, col_i, col_j, col_k], axis=1)


def make_qlinear_params(key, in_real, out_real):
    in_q, out_q = in_real // 4, out_real // 4
    kr, ki, kj, kk, kb = jax.random.split(key, 5)
    scale = 1.0 / np.sqrt(2.0 * (in_q + out_q))           # glorot-like
    r = jax.random.normal(kr, (in_q, out_q), jnp.float32) * scale
    i = jax.random.normal(ki, (in_q, out_q), jnp.float32) * scale
    j = jax.random.normal(kj, (in_q, out_q), jnp.float32) * scale
    k = jax.random.normal(kk, (in_q, out_q), jnp.float32) * scale
    W = _quat_dense_matrix(r, i, j, k)                    # (in_real, out_real)
    b = jax.random.normal(kb, (1, out_real), jnp.float32) * 0.01
    return W, b


def _pad_gate_cols(m, h4, h4p):
    """Pad each of the 4 contiguous gate quarters (width h4) to h4p lanes."""
    if h4p == h4:
        return m
    lead = m.shape[:-1]
    m = m.reshape(*lead, 4, h4)
    m = jnp.pad(m, [(0, 0)] * (len(lead) + 1) + [(0, h4p - h4)])
    return m.reshape(*lead, 4 * h4p)


class QLSTMPallas:
    """JAX/Pallas port of QLSTM (eval mode, unidirectional, hx=None)."""
    # TODO(synk): training-mode recurrent dropout and the bidirectional path
    # are not implemented (module defaults: dropout inactive in eval,
    # bidirectional=False).

    def __init__(self, hidden_size, input_shape, num_layers=1, key=None):
        self.h4 = hidden_size * 4                 # real-valued hidden dim
        self.h4p = _round_up(self.h4, 128)        # lane-aligned hidden dim
        self.num_layers = num_layers
        self.reshape = len(input_shape) > 3
        fea_dim = int(np.prod(input_shape[2:]))
        if key is None:
            key = jax.random.PRNGKey(0)

        self.raw_layers = []   # (W, bw, U, bu) exactly like the torch module
        self.layers = []       # folded-bias / lane-padded / bf16 kernel params
        current_dim = fea_dim
        for _ in range(num_layers):
            key, kw, ku = jax.random.split(key, 3)
            gate_dim = 4 * self.h4                # i, f, o, c gates
            W, bw = make_qlinear_params(kw, current_dim, gate_dim)
            U, bu = make_qlinear_params(ku, self.h4, gate_dim)
            self.raw_layers.append((W, bw, U, bu))

            Wp = _pad_gate_cols(W, self.h4, self.h4p)          # (D, Gp)
            bp = _pad_gate_cols(bw + bu, self.h4, self.h4p)    # (1, Gp) folded
            Up = _pad_gate_cols(U, self.h4, self.h4p)          # (H4, Gp)
            Up = jnp.pad(Up, ((0, self.h4p - self.h4), (0, 0)))
            Up = Up.astype(jnp.bfloat16)                       # (H4p, Gp)
            self.layers.append((Wp, bp, Up))
            current_dim = self.h4

    def __call__(self, x):
        if self.reshape and x.ndim == 4:
            x = x.reshape(x.shape[0], x.shape[1], x.shape[2] * x.shape[3])
        B, T, _ = x.shape

        h_last = []
        y_tb = None
        for li, (Wp, bp, Up) in enumerate(self.layers):
            # Hoisted projection: one big GEMM, output already time-major.
            if li == 0:
                wx = jnp.einsum("btd,dg->tbg", x, Wp) + bp
            else:
                wx = jnp.einsum("tbd,dg->tbg", y_tb, Wp) + bp
            y_tb = qlstm_recurrence(wx, Up, T, B, self.h4)     # (T, B, H4)
            h_last.append(y_tb[-1])                            # (B, H4)

        out = jnp.transpose(y_tb, (1, 0, 2))                   # (B, T, H4)
        h = jnp.stack(h_last, axis=0)                          # (L, B, H4)
        return out, h


# ----------------------------------------------------------------------------
# Pure-JAX references for correctness checking.
# ----------------------------------------------------------------------------
def qlstm_layer_ref(x, W, bw, U, bu, u_dtype=jnp.float32):
    B, T, _ = x.shape
    H4 = U.shape[0]
    wx = jnp.einsum("btd,dg->btg", x, W) + (bw + bu)           # (B, T, 4*H4)
    Uc = U.astype(u_dtype)

    def step(carry, wx_t):
        h, c = carry
        gates = wx_t + jnp.dot(h.astype(u_dtype), Uc,
                               preferred_element_type=jnp.float32)
        i_g = jax.nn.sigmoid(gates[:, 0 * H4:1 * H4])
        f_g = jax.nn.sigmoid(gates[:, 1 * H4:2 * H4])
        o_g = jax.nn.sigmoid(gates[:, 2 * H4:3 * H4])
        g_g = jnp.tanh(gates[:, 3 * H4:4 * H4])
        c = i_g * g_g + f_g * c
        h = o_g * jnp.tanh(c)
        return (h, c), h

    h0 = jnp.zeros((B, H4), jnp.float32)
    (_, _), hs = jax.lax.scan(step, (h0, h0), jnp.transpose(wx, (1, 0, 2)))
    return jnp.transpose(hs, (1, 0, 2))


def qlstm_ref(x, raw_layers, reshape, u_dtype=jnp.float32):
    if reshape and x.ndim == 4:
        x = x.reshape(x.shape[0], x.shape[1], -1)
    h_last = []
    for (W, bw, U, bu) in raw_layers:
        x = qlstm_layer_ref(x, W, bw, U, bu, u_dtype=u_dtype)
        h_last.append(x[:, -1, :])
    return x, jnp.stack(h_last, axis=0)


# ----------------------------------------------------------------------------
if __name__ == "__main__":
    key = jax.random.PRNGKey(0)
    kx, kp = jax.random.split(key)

    B, T, FEA, CH = 2, 8, 4, 4     # (batch, time, fea, channel) -> fea_dim 16
    HQ = 8                         # quaternion hidden units -> real hidden 32
    L = 2                          # layers

    x = jax.random.normal(kx, (B, T, FEA, CH), jnp.float32)

    model = QLSTMPallas(hidden_size=HQ, input_shape=(B, T, FEA, CH),
                        num_layers=L, key=kp)

    out, hh = model(x)
    out = jax.block_until_ready(out)
    hh = jax.block_until_ready(hh)

    H = 4 * HQ
    assert out.shape == (B, T, H), out.shape
    assert hh.shape == (L, B, H), hh.shape

    # 1) Tight check vs. a lax.scan reference that mirrors the kernel's
    #    arithmetic (bf16 recurrent weights, f32 accumulation).
    ref_out, ref_h = qlstm_ref(x, model.raw_layers, model.reshape,
                               u_dtype=jnp.bfloat16)
    np.testing.assert_allclose(np.asarray(out), np.asarray(ref_out),
                               rtol=5e-3, atol=5e-3)
    np.testing.assert_allclose(np.asarray(hh), np.asarray(ref_h),
                               rtol=5e-3, atol=5e-3)

    # 2) Semantic sanity check vs. the full-f32 original-module math.
    f32_out, f32_h = qlstm_ref(x, model.raw_layers, model.reshape,
                               u_dtype=jnp.float32)
    np.testing.assert_allclose(np.asarray(out), np.asarray(f32_out),
                               rtol=3e-2, atol=3e-2)
    np.testing.assert_allclose(np.asarray(hh), np.asarray(f32_h),
                               rtol=3e-2, atol=3e-2)

    print("KERNEL_OK")
</pallas_src>

<mosaic_0001>
module attributes {stable_mosaic.version = 11 : i64} {
  func.func @_qlstm_recurrent_kernel(%arg0: i32, %arg1: i32, %arg2: memref<8x8x512xf32, #tpu.memory_space<vmem>>, %arg3: memref<128x512xbf16, #tpu.memory_space<vmem>>, %arg4: memref<8x8x128xf32, #tpu.memory_space<vmem>>, %arg5: memref<8x128xf32, #tpu.memory_space<vmem>>, %arg6: memref<8x128xf32, #tpu.memory_space<vmem>>) attributes {dimension_semantics = [#tpu.dimension_semantics<parallel>, #tpu.dimension_semantics<arbitrary>], iteration_bounds = array<i64: 1, 1>, scalar_prefetch = 0 : i64, scratch_operands = 2 : i64, tpu.core_type = #tpu.core_type<tc>, window_params = [{transform_indices = @transform_0, window_bounds = array<i64: 8, 8, 512>}, {pipeline_mode = #tpu.pipeline_mode<synchronous>, transform_indices = @transform_1, window_bounds = array<i64: 128, 512>}, {transform_indices = @transform_2, window_bounds = array<i64: 8, 8, 128>}]} {
    %c0_i32 = arith.constant 0 : i32
    %0 = arith.cmpi eq, %arg1, %c0_i32 : i32
    %1 = arith.extui %0 : i1 to i32
    %c0_i32_0 = arith.constant 0 : i32
    %2 = arith.cmpi ne, %1, %c0_i32_0 : i32
    scf.if %2 {
      %cst_58 = arith.constant 0.000000e+00 : f32
      %216 = vector.broadcast %cst_58 : f32 to vector<8x128xf32>
      %c0_59 = arith.constant 0 : index
      %c0_60 = arith.constant 0 : index
      %217 = vector.load %arg5[%c0_59, %c0_60] : memref<8x128xf32, #tpu.memory_space<vmem>>, vector<8x128xf32>
      tpu.vector_store %arg5[%c0_59, %c0_60], %216 {strides = array<i32>} : memref<8x128xf32, #tpu.memory_space<vmem>>, vector<8x128xf32>,
      %cst_61 = arith.constant 0.000000e+00 : f32
      %218 = vector.broadcast %cst_61 : f32 to vector<8x128xf32>
      %c0_62 = arith.constant 0 : index
      %c0_63 = arith.constant 0 : index
      %219 = vector.load %arg6[%c0_62, %c0_63] : memref<8x128xf32, #tpu.memory_space<vmem>>, vector<8x128xf32>
      tpu.vector_store %arg6[%c0_62, %c0_63], %218 {strides = array<i32>} : memref<8x128xf32, #tpu.memory_space<vmem>>, vector<8x128xf32>,
    } else {
    }
    %c0 = arith.constant 0 : index
    %c0_1 = arith.constant 0 : index
    %3 = vector.load %arg3[%c0, %c0_1] : memref<128x512xbf16, #tpu.memory_space<vmem>>, vector<128x512xbf16>
    %c0_2 = arith.constant 0 : index
    %c0_3 = arith.constant 0 : index
    %4 = vector.load %arg5[%c0_2, %c0_3] : memref<8x128xf32, #tpu.memory_space<vmem>>, vector<8x128xf32>
    %c0_4 = arith.constant 0 : index
    %c0_5 = arith.constant 0 : index
    %5 = vector.load %arg6[%c0_4, %c0_5] : memref<8x128xf32, #tpu.memory_space<vmem>>, vector<8x128xf32>
    %c0_i32_6 = arith.constant 0 : i32
    %6 = arith.index_cast %c0_i32_6 : i32 to index
    %c0_7 = arith.constant 0 : index
    %c0_8 = arith.constant 0 : index
    %7 = vector.load %arg2[%6, %c0_7, %c0_8] : memref<8x8x512xf32, #tpu.memory_space<vmem>>, vector<1x8x512xf32>
    %8 = vector.shape_cast %7 : vector<1x8x512xf32> to vector<8x512xf32>
    %9 = arith.truncf %4 : vector<8x128xf32> to vector<8x128xbf16>
    %cst = arith.constant dense<0.000000e+00> : vector<8x512xf32>
    %10 = tpu.matmul %9, %3, %cst {dimension_numbers = #tpu.dot_dimension_numbers<[1], [0], [0], [1], [0, 0, 1, 1], [], []>} : vector<8x128xbf16>, vector<128x512xbf16>, vector<8x512xf32> -> vector<8x512xf32>
    %11 = arith.addf %8, %10 : vector<8x512xf32>
    %12 = vector.extract_strided_slice %11 {offsets = [0, 0], sizes = [8, 384], strides = [1, 1]} : vector<8x512xf32> to vector<8x384xf32>
    %13 = arith.negf %12 : vector<8x384xf32>
    %14 = math.exp %13 : vector<8x384xf32>
    %cst_9 = arith.constant 1.000000e+00 : f32
    %15 = vector.broadcast %cst_9 : f32 to vector<8x384xf32>
    %16 = arith.addf %15, %14 : vector<8x384xf32>
    %17 = arith.divf %15, %16 : vector<8x384xf32>
    %18 = vector.extract_strided_slice %11 {offsets = [0, 384], sizes = [8, 128], strides = [1, 1]} : vector<8x512xf32> to vector<8x128xf32>
    %19 = math.tanh %18 : vector<8x128xf32>
    %20 = vector.extract_strided_slice %17 {offsets = [0, 0], sizes = [8, 128], strides = [1, 1]} : vector<8x384xf32> to vector<8x128xf32>
    %21 = arith.mulf %20, %19 : vector<8x128xf32>
    %22 = vector.extract_strided_slice %17 {offsets = [0, 128], sizes = [8, 128], strides = [1, 1]} : vector<8x384xf32> to vector<8x128xf32>
    %23 = arith.mulf %22, %5 : vector<8x128xf32>
    %24 = arith.addf %21, %23 : vector<8x128xf32>
    %25 = vector.extract_strided_slice %17 {offsets = [0, 256], sizes = [8, 128], strides = [1, 1]} : vector<8x384xf32> to vector<8x128xf32>
    %26 = math.tanh %24 : vector<8x128xf32>
    %27 = arith.mulf %25, %26 : vector<8x128xf32>
    %28 = arith.index_cast %c0_i32_6 : i32 to index
    %c0_10 = arith.constant 0 : index
    %c0_11 = arith.constant 0 : index
    %29 = vector.load %arg4[%28, %c0_10, %c0_11] : memref<8x8x128xf32, #tpu.memory_space<vmem>>, vector<1x8x128xf32>
    %30 = vector.shape_cast %29 : vector<1x8x128xf32> to vector<8x128xf32>
    %31 = vector.shape_cast %27 : vector<8x128xf32> to vector<1x8x128xf32>
    tpu.vector_store %arg4[%28, %c0_10, %c0_11], %31 {strides = array<i32>} : memref<8x8x128xf32, #tpu.memory_space<vmem>>, vector<1x8x128xf32>,
    %c1_i32 = arith.constant 1 : i32
    %32 = arith.index_cast %c1_i32 : i32 to index
    %c0_12 = arith.constant 0 : index
    %c0_13 = arith.constant 0 : index
    %33 = vector.load %arg2[%32, %c0_12, %c0_13] : memref<8x8x512xf32, #tpu.memory_space<vmem>>, vector<1x8x512xf32>
    %34 = vector.shape_cast %33 : vector<1x8x512xf32> to vector<8x512xf32>
    %35 = arith.truncf %27 : vector<8x128xf32> to vector<8x128xbf16>
    %cst_14 = arith.constant dense<0.000000e+00> : vector<8x512xf32>
    %36 = tpu.matmul %35, %3, %cst_14 {dimension_numbers = #tpu.dot_dimension_numbers<[1], [0], [0], [1], [0, 0, 1, 1], [], []>} : vector<8x128xbf16>, vector<128x512xbf16>, vector<8x512xf32> -> vector<8x512xf32>
    %37 = arith.addf %34, %36 : vector<8x512xf32>
    %38 = vector.extract_strided_slice %37 {offsets = [0, 0], sizes = [8, 384], strides = [1, 1]} : vector<8x512xf32> to vector<8x384xf32>
    %39 = arith.negf %38 : vector<8x384xf32>
    %40 = math.exp %39 : vector<8x384xf32>
    %cst_15 = arith.constant 1.000000e+00 : f32
    %41 = vector.broadcast %cst_15 : f32 to vector<8x384xf32>
    %42 = arith.addf %41, %40 : vector<8x384xf32>
    %43 = arith.divf %41, %42 : vector<8x384xf32>
    %44 = vector.extract_strided_slice %37 {offsets = [0, 384], sizes = [8, 128], strides = [1, 1]} : vector<8x512xf32> to vector<8x128xf32>
    %45 = math.tanh %44 : vector<8x128xf32>
    %46 = vector.extract_strided_slice %43 {offsets = [0, 0], sizes = [8, 128], strides = [1, 1]} : vector<8x384xf32> to vector<8x128xf32>
    %47 = arith.mulf %46, %45 : vector<8x128xf32>
    %48 = vector.extract_strided_slice %43 {offsets = [0, 128], sizes = [8, 128], strides = [1, 1]} : vector<8x384xf32> to vector<8x128xf32>
    %49 = arith.mulf %48, %24 : vector<8x128xf32>
    %50 = arith.addf %47, %49 : vector<8x128xf32>
    %51 = vector.extract_strided_slice %43 {offsets = [0, 256], sizes = [8, 128], strides = [1, 1]} : vector<8x384xf32> to vector<8x128xf32>
    %52 = math.tanh %50 : vector<8x128xf32>
    %53 = arith.mulf %51, %52 : vector<8x128xf32>
    %54 = arith.index_cast %c1_i32 : i32 to index
    %c0_16 = arith.constant 0 : index
    %c0_17 = arith.constant 0 : index
    %55 = vector.load %arg4[%54, %c0_16, %c0_17] : memref<8x8x128xf32, #tpu.memory_space<vmem>>, vector<1x8x128xf32>
    %56 = vector.shape_cast %55 : vector<1x8x128xf32> to vector<8x128xf32>
    %57 = vector.shape_cast %53 : vector<8x128xf32> to vector<1x8x128xf32>
    tpu.vector_store %arg4[%54, %c0_16, %c0_17], %57 {strides = array<i32>} : memref<8x8x128xf32, #tpu.memory_space<vmem>>, vector<1x8x128xf32>,
    %c2_i32 = arith.constant 2 : i32
    %58 = arith.index_cast %c2_i32 : i32 to index
    %c0_18 = arith.constant 0 : index
    %c0_19 = arith.constant 0 : index
    %59 = vector.load %arg2[%58, %c0_18, %c0_19] : memref<8x8x512xf32, #tpu.memory_space<vmem>>, vector<1x8x512xf32>
    %60 = vector.shape_cast %59 : vector<1x8x512xf32> to vector<8x512xf32>
    %61 = arith.truncf %53 : vector<8x128xf32> to vector<8x128xbf16>
    %cst_20 = arith.constant dense<0.000000e+00> : vector<8x512xf32>
    %62 = tpu.matmul %61, %3, %cst_20 {dimension_numbers = #tpu.dot_dimension_numbers<[1], [0], [0], [1], [0, 0, 1, 1], [], []>} : vector<8x128xbf16>, vector<128x512xbf16>, vector<8x512xf32> -> vector<8x512xf32>
    %63 = arith.addf %60, %62 : vector<8x512xf32>
    %64 = vector.extract_strided_slice %63 {offsets = [0, 0], sizes = [8, 384], strides = [1, 1]} : vector<8x512xf32> to vector<8x384xf32>
    %65 = arith.negf %64 : vector<8x384xf32>
    %66 = math.exp %65 : vector<8x384xf32>
    %cst_21 = arith.constant 1.000000e+00 : f32
    %67 = vector.broadcast %cst_21 : f32 to vector<8x384xf32>
    %68 = arith.addf %67, %66 : vector<8x384xf32>
    %69 = arith.divf %67, %68 : vector<8x384xf32>
    %70 = vector.extract_strided_slice %63 {offsets = [0, 384], sizes = [8, 128], strides = [1, 1]} : vector<8x512xf32> to vector<8x128xf32>
    %71 = math.tanh %70 : vector<8x128xf32>
    %72 = vector.extract_strided_slice %69 {offsets = [0, 0], sizes = [8, 128], strides = [1, 1]} : vector<8x384xf32> to vector<8x128xf32>
    %73 = arith.mulf %72, %71 : vector<8x128xf32>
    %74 = vector.extract_strided_slice %69 {offsets = [0, 128], sizes = [8, 128], strides = [1, 1]} : vector<8x384xf32> to vector<8x128xf32>
    %75 = arith.mulf %74, %50 : vector<8x128xf32>
    %76 = arith.addf %73, %75 : vector<8x128xf32>
    %77 = vector.extract_strided_slice %69 {offsets = [0, 256], sizes = [8, 128], strides = [1, 1]} : vector<8x384xf32> to vector<8x128xf32>
    %78 = math.tanh %76 : vector<8x128xf32>
    %79 = arith.mulf %77, %78 : vector<8x128xf32>
    %80 = arith.index_cast %c2_i32 : i32 to index
    %c0_22 = arith.constant 0 : index
    %c0_23 = arith.constant 0 : index
    %81 = vector.load %arg4[%80, %c0_22, %c0_23] : memref<8x8x128xf32, #tpu.memory_space<vmem>>, vector<1x8x128xf32>
    %82 = vector.shape_cast %81 : vector<1x8x128xf32> to vector<8x128xf32>
    %83 = vector.shape_cast %79 : vector<8x128xf32> to vector<1x8x128xf32>
    tpu.vector_store %arg4[%80, %c0_22, %c0_23], %83 {strides = array<i32>} : memref<8x8x128xf32, #tpu.memory_space<vmem>>, vector<1x8x128xf32>,
    %c3_i32 = arith.constant 3 : i32
    %84 = arith.index_cast %c3_i32 : i32 to index
    %c0_24 = arith.constant 0 : index
    %c0_25 = arith.constant 0 : index
    %85 = vector.load %arg2[%84, %c0_24, %c0_25] : memref<8x8x512xf32, #tpu.memory_space<vmem>>, vector<1x8x512xf32>
    %86 = vector.shape_cast %85 : vector<1x8x512xf32> to vector<8x512xf32>
    %87 = arith.truncf %79 : vector<8x128xf32> to vector<8x128xbf16>
    %cst_26 = arith.constant dense<0.000000e+00> : vector<8x512xf32>
    %88 = tpu.matmul %87, %3, %cst_26 {dimension_numbers = #tpu.dot_dimension_numbers<[1], [0], [0], [1], [0, 0, 1, 1], [], []>} : vector<8x128xbf16>, vector<128x512xbf16>, vector<8x512xf32> -> vector<8x512xf32>
    %89 = arith.addf %86, %88 : vector<8x512xf32>
    %90 = vector.extract_strided_slice %89 {offsets = [0, 0], sizes = [8, 384], strides = [1, 1]} : vector<8x512xf32> to vector<8x384xf32>
    %91 = arith.negf %90 : vector<8x384xf32>
    %92 = math.exp %91 : vector<8x384xf32>
    %cst_27 = arith.constant 1.000000e+00 : f32
    %93 = vector.broadcast %cst_27 : f32 to vector<8x384xf32>
    %94 = arith.addf %93, %92 : vector<8x384xf32>
    %95 = arith.divf %93, %94 : vector<8x384xf32>
    %96 = vector.extract_strided_slice %89 {offsets = [0, 384], sizes = [8, 128], strides = [1, 1]} : vector<8x512xf32> to vector<8x128xf32>
    %97 = math.tanh %96 : vector<8x128xf32>
    %98 = vector.extract_strided_slice %95 {offsets = [0, 0], sizes = [8, 128], strides = [1, 1]} : vector<8x384xf32> to vector<8x128xf32>
    %99 = arith.mulf %98, %97 : vector<8x128xf32>
    %100 = vector.extract_strided_slice %95 {offsets = [0, 128], sizes = [8, 128], strides = [1, 1]} : vector<8x384xf32> to vector<8x128xf32>
    %101 = arith.mulf %100, %76 : vector<8x128xf32>
    %102 = arith.addf %99, %101 : vector<8x128xf32>
    %103 = vector.extract_strided_slice %95 {offsets = [0, 256], sizes = [8, 128], strides = [1, 1]} : vector<8x384xf32> to vector<8x128xf32>
    %104 = math.tanh %102 : vector<8x128xf32>
    %105 = arith.mulf %103, %104 : vector<8x128xf32>
    %106 = arith.index_cast %c3_i32 : i32 to index
    %c0_28 = arith.constant 0 : index
    %c0_29 = arith.constant 0 : index
    %107 = vector.load %arg4[%106, %c0_28, %c0_29] : memref<8x8x128xf32, #tpu.memory_space<vmem>>, vector<1x8x128xf32>
    %108 = vector.shape_cast %107 : vector<1x8x128xf32> to vector<8x128xf32>
    %109 = vector.shape_cast %105 : vector<8x128xf32> to vector<1x8x128xf32>
    tpu.vector_store %arg4[%106, %c0_28, %c0_29], %109 {strides = array<i32>} : memref<8x8x128xf32, #tpu.memory_space<vmem>>, vector<1x8x128xf32>,
    %c4_i32 = arith.constant 4 : i32
    %110 = arith.index_cast %c4_i32 : i32 to index
    %c0_30 = arith.constant 0 : index
    %c0_31 = arith.constant 0 : index
    %111 = vector.load %arg2[%110, %c0_30, %c0_31] : memref<8x8x512xf32, #tpu.memory_space<vmem>>, vector<1x8x512xf32>
    %112 = vector.shape_cast %111 : vector<1x8x512xf32> to vector<8x512xf32>
    %113 = arith.truncf %105 : vector<8x128xf32> to vector<8x128xbf16>
    %cst_32 = arith.constant dense<0.000000e+00> : vector<8x512xf32>
    %114 = tpu.matmul %113, %3, %cst_32 {dimension_numbers = #tpu.dot_dimension_numbers<[1], [0], [0], [1], [0, 0, 1, 1], [], []>} : vector<8x128xbf16>, vector<128x512xbf16>, vector<8x512xf32> -> vector<8x512xf32>
    %115 = arith.addf %112, %114 : vector<8x512xf32>
    %116 = vector.extract_strided_slice %115 {offsets = [0, 0], sizes = [8, 384], strides = [1, 1]} : vector<8x512xf32> to vector<8x384xf32>
    %117 = arith.negf %116 : vector<8x384xf32>
    %118 = math.exp %117 : vector<8x384xf32>
    %cst_33 = arith.constant 1.000000e+00 : f32
    %119 = vector.broadcast %cst_33 : f32 to vector<8x384xf32>
    %120 = arith.addf %119, %118 : vector<8x384xf32>
    %121 = arith.divf %119, %120 : vector<8x384xf32>
    %122 = vector.extract_strided_slice %115 {offsets = [0, 384], sizes = [8, 128], strides = [1, 1]} : vector<8x512xf32> to vector<8x128xf32>
    %123 = math.tanh %122 : vector<8x128xf32>
    %124 = vector.extract_strided_slice %121 {offsets = [0, 0], sizes = [8, 128], strides = [1, 1]} : vector<8x384xf32> to vector<8x128xf32>
    %125 = arith.mulf %124, %123 : vector<8x128xf32>
    %126 = vector.extract_strided_slice %121 {offsets = [0, 128], sizes = [8, 128], strides = [1, 1]} : vector<8x384xf32> to vector<8x128xf32>
    %127 = arith.mulf %126, %102 : vector<8x128xf32>
    %128 = arith.addf %125, %127 : vector<8x128xf32>
    %129 = vector.extract_strided_slice %121 {offsets = [0, 256], sizes = [8, 128], strides = [1, 1]} : vector<8x384xf32> to vector<8x128xf32>
    %130 = math.tanh %128 : vector<8x128xf32>
    %131 = arith.mulf %129, %130 : vector<8x128xf32>
    %132 = arith.index_cast %c4_i32 : i32 to index
    %c0_34 = arith.constant 0 : index
    %c0_35 = arith.constant 0 : index
    %133 = vector.load %arg4[%132, %c0_34, %c0_35] : memref<8x8x128xf32, #tpu.memory_space<vmem>>, vector<1x8x128xf32>
    %134 = vector.shape_cast %133 : vector<1x8x128xf32> to vector<8x128xf32>
    %135 = vector.shape_cast %131 : vector<8x128xf32> to vector<1x8x128xf32>
    tpu.vector_store %arg4[%132, %c0_34, %c0_35], %135 {strides = array<i32>} : memref<8x8x128xf32, #tpu.memory_space<vmem>>, vector<1x8x128xf32>,
    %c5_i32 = arith.constant 5 : i32
    %136 = arith.index_cast %c5_i32 : i32 to index
    %c0_36 = arith.constant 0 : index
    %c0_37 = arith.constant 0 : index
    %137 = vector.load %arg2[%136, %c0_36, %c0_37] : memref<8x8x512xf32, #tpu.memory_space<vmem>>, vector<1x8x512xf32>
    %138 = vector.shape_cast %137 : vector<1x8x512xf32> to vector<8x512xf32>
    %139 = arith.truncf %131 : vector<8x128xf32> to vector<8x128xbf16>
    %cst_38 = arith.constant dense<0.000000e+00> : vector<8x512xf32>
    %140 = tpu.matmul %139, %3, %cst_38 {dimension_numbers = #tpu.dot_dimension_numbers<[1], [0], [0], [1], [0, 0, 1, 1], [], []>} : vector<8x128xbf16>, vector<128x512xbf16>, vector<8x512xf32> -> vector<8x512xf32>
    %141 = arith.addf %138, %140 : vector<8x512xf32>
    %142 = vector.extract_strided_slice %141 {offsets = [0, 0], sizes = [8, 384], strides = [1, 1]} : vector<8x512xf32> to vector<8x384xf32>
    %143 = arith.negf %142 : vector<8x384xf32>
    %144 = math.exp %143 : vector<8x384xf32>
    %cst_39 = arith.constant 1.000000e+00 : f32
    %145 = vector.broadcast %cst_39 : f32 to vector<8x384xf32>
    %146 = arith.addf %145, %144 : vector<8x384xf32>
    %147 = arith.divf %145, %146 : vector<8x384xf32>
    %148 = vector.extract_strided_slice %141 {offsets = [0, 384], sizes = [8, 128], strides = [1, 1]} : vector<8x512xf32> to vector<8x128xf32>
    %149 = math.tanh %148 : vector<8x128xf32>
    %150 = vector.extract_strided_slice %147 {offsets = [0, 0], sizes = [8, 128], strides = [1, 1]} : vector<8x384xf32> to vector<8x128xf32>
    %151 = arith.mulf %150, %149 : vector<8x128xf32>
    %152 = vector.extract_strided_slice %147 {offsets = [0, 128], sizes = [8, 128], strides = [1, 1]} : vector<8x384xf32> to vector<8x128xf32>
    %153 = arith.mulf %152, %128 : vector<8x128xf32>
    %154 = arith.addf %151, %153 : vector<8x128xf32>
    %155 = vector.extract_strided_slice %147 {offsets = [0, 256], sizes = [8, 128], strides = [1, 1]} : vector<8x384xf32> to vector<8x128xf32>
    %156 = math.tanh %154 : vector<8x128xf32>
    %157 = arith.mulf %155, %156 : vector<8x128xf32>
    %158 = arith.index_cast %c5_i32 : i32 to index
    %c0_40 = arith.constant 0 : index
    %c0_41 = arith.constant 0 : index
    %159 = vector.load %arg4[%158, %c0_40, %c0_41] : memref<8x8x128xf32, #tpu.memory_space<vmem>>, vector<1x8x128xf32>
    %160 = vector.shape_cast %159 : vector<1x8x128xf32> to vector<8x128xf32>
    %161 = vector.shape_cast %157 : vector<8x128xf32> to vector<1x8x128xf32>
    tpu.vector_store %arg4[%158, %c0_40, %c0_41], %161 {strides = array<i32>} : memref<8x8x128xf32, #tpu.memory_space<vmem>>, vector<1x8x128xf32>,
    %c6_i32 = arith.constant 6 : i32
    %162 = arith.index_cast %c6_i32 : i32 to index
    %c0_42 = arith.constant 0 : index
    %c0_43 = arith.constant 0 : index
    %163 = vector.load %arg2[%162, %c0_42, %c0_43] : memref<8x8x512xf32, #tpu.memory_space<vmem>>, vector<1x8x512xf32>
    %164 = vector.shape_cast %163 : vector<1x8x512xf32> to vector<8x512xf32>
    %165 = arith.truncf %157 : vector<8x128xf32> to vector<8x128xbf16>
    %cst_44 = arith.constant dense<0.000000e+00> : vector<8x512xf32>
    %166 = tpu.matmul %165, %3, %cst_44 {dimension_numbers = #tpu.dot_dimension_numbers<[1], [0], [0], [1], [0, 0, 1, 1], [], []>} : vector<8x128xbf16>, vector<128x512xbf16>, vector<8x512xf32> -> vector<8x512xf32>
    %167 = arith.addf %164, %166 : vector<8x512xf32>
    %168 = vector.extract_strided_slice %167 {offsets = [0, 0], sizes = [8, 384], strides = [1, 1]} : vector<8x512xf32> to vector<8x384xf32>
    %169 = arith.negf %168 : vector<8x384xf32>
    %170 = math.exp %169 : vector<8x384xf32>
    %cst_45 = arith.constant 1.000000e+00 : f32
    %171 = vector.broadcast %cst_45 : f32 to vector<8x384xf32>
    %172 = arith.addf %171, %170 : vector<8x384xf32>
    %173 = arith.divf %171, %172 : vector<8x384xf32>
    %174 = vector.extract_strided_slice %167 {offsets = [0, 384], sizes = [8, 128], strides = [1, 1]} : vector<8x512xf32> to vector<8x128xf32>
    %175 = math.tanh %174 : vector<8x128xf32>
    %176 = vector.extract_strided_slice %173 {offsets = [0, 0], sizes = [8, 128], strides = [1, 1]} : vector<8x384xf32> to vector<8x128xf32>
    %177 = arith.mulf %176, %175 : vector<8x128xf32>
    %178 = vector.extract_strided_slice %173 {offsets = [0, 128], sizes = [8, 128], strides = [1, 1]} : vector<8x384xf32> to vector<8x128xf32>
    %179 = arith.mulf %178, %154 : vector<8x128xf32>
    %180 = arith.addf %177, %179 : vector<8x128xf32>
    %181 = vector.extract_strided_slice %173 {offsets = [0, 256], sizes = [8, 128], strides = [1, 1]} : vector<8x384xf32> to vector<8x128xf32>
    %182 = math.tanh %180 : vector<8x128xf32>
    %183 = arith.mulf %181, %182 : vector<8x128xf32>
    %184 = arith.index_cast %c6_i32 : i32 to index
    %c0_46 = arith.constant 0 : index
    %c0_47 = arith.constant 0 : index
    %185 = vector.load %arg4[%184, %c0_46, %c0_47] : memref<8x8x128xf32, #tpu.memory_space<vmem>>, vector<1x8x128xf32>
    %186 = vector.shape_cast %185 : vector<1x8x128xf32> to vector<8x128xf32>
    %187 = vector.shape_cast %183 : vector<8x128xf32> to vector<1x8x128xf32>
    tpu.vector_store %arg4[%184, %c0_46, %c0_47], %187 {strides = array<i32>} : memref<8x8x128xf32, #tpu.memory_space<vmem>>, vector<1x8x128xf32>,
    %c7_i32 = arith.constant 7 : i32
    %188 = arith.index_cast %c7_i32 : i32 to index
    %c0_48 = arith.constant 0 : index
    %c0_49 = arith.constant 0 : index
    %189 = vector.load %arg2[%188, %c0_48, %c0_49] : memref<8x8x512xf32, #tpu.memory_space<vmem>>, vector<1x8x512xf32>
    %190 = vector.shape_cast %189 : vector<1x8x512xf32> to vector<8x512xf32>
    %191 = arith.truncf %183 : vector<8x128xf32> to vector<8x128xbf16>
    %cst_50 = arith.constant dense<0.000000e+00> : vector<8x512xf32>
    %192 = tpu.matmul %191, %3, %cst_50 {dimension_numbers = #tpu.dot_dimension_numbers<[1], [0], [0], [1], [0, 0, 1, 1], [], []>} : vector<8x128xbf16>, vector<128x512xbf16>, vector<8x512xf32> -> vector<8x512xf32>
    %193 = arith.addf %190, %192 : vector<8x512xf32>
    %194 = vector.extract_strided_slice %193 {offsets = [0, 0], sizes = [8, 384], strides = [1, 1]} : vector<8x512xf32> to vector<8x384xf32>
    %195 = arith.negf %194 : vector<8x384xf32>
    %196 = math.exp %195 : vector<8x384xf32>
    %cst_51 = arith.constant 1.000000e+00 : f32
    %197 = vector.broadcast %cst_51 : f32 to vector<8x384xf32>
    %198 = arith.addf %197, %196 : vector<8x384xf32>
    %199 = arith.divf %197, %198 : vector<8x384xf32>
    %200 = vector.extract_strided_slice %193 {offsets = [0, 384], sizes = [8, 128], strides = [1, 1]} : vector<8x512xf32> to vector<8x128xf32>
    %201 = math.tanh %200 : vector<8x128xf32>
    %202 = vector.extract_strided_slice %199 {offsets = [0, 0], sizes = [8, 128], strides = [1, 1]} : vector<8x384xf32> to vector<8x128xf32>
    %203 = arith.mulf %202, %201 : vector<8x128xf32>
    %204 = vector.extract_strided_slice %199 {offsets = [0, 128], sizes = [8, 128], strides = [1, 1]} : vector<8x384xf32> to vector<8x128xf32>
    %205 = arith.mulf %204, %180 : vector<8x128xf32>
    %206 = arith.addf %203, %205 : vector<8x128xf32>
    %207 = vector.extract_strided_slice %199 {offsets = [0, 256], sizes = [8, 128], strides = [1, 1]} : vector<8x384xf32> to vector<8x128xf32>
    %208 = math.tanh %206 : vector<8x128xf32>
    %209 = arith.mulf %207, %208 : vector<8x128xf32>
    %210 = arith.index_cast %c7_i32 : i32 to index
    %c0_52 = arith.constant 0 : index
    %c0_53 = arith.constant 0 : index
    %211 = vector.load %arg4[%210, %c0_52, %c0_53] : memref<8x8x128xf32, #tpu.memory_space<vmem>>, vector<1x8x128xf32>
    %212 = vector.shape_cast %211 : vector<1x8x128xf32> to vector<8x128xf32>
    %213 = vector.shape_cast %209 : vector<8x128xf32> to vector<1x8x128xf32>
    tpu.vector_store %arg4[%210, %c0_52, %c0_53], %213 {strides = array<i32>} : memref<8x8x128xf32, #tpu.memory_space<vmem>>, vector<1x8x128xf32>,
    %c8_i32 = arith.constant 8 : i32
    %c0_54 = arith.constant 0 : index
    %c0_55 = arith.constant 0 : index
    %214 = vector.load %arg5[%c0_54, %c0_55] : memref<8x128xf32, #tpu.memory_space<vmem>>, vector<8x128xf32>
    tpu.vector_store %arg5[%c0_54, %c0_55], %209 {strides = array<i32>} : memref<8x128xf32, #tpu.memory_space<vmem>>, vector<8x128xf32>,
    %c0_56 = arith.constant 0 : index
    %c0_57 = arith.constant 0 : index
    %215 = vector.load %arg6[%c0_56, %c0_57] : memref<8x128xf32, #tpu.memory_space<vmem>>, vector<8x128xf32>
    tpu.vector_store %arg6[%c0_56, %c0_57], %206 {strides = array<i32>} : memref<8x128xf32, #tpu.memory_space<vmem>>, vector<8x128xf32>,
    return
  }
  func.func @transform_0(%arg0: i32, %arg1: i32) -> (i32, i32, i32) {
    %c0_i32 = arith.constant 0 : i32
    %c0_i32_0 = arith.constant 0 : i32
    return %arg1, %arg0, %c0_i32 : i32, i32, i32
  }
  func.func @transform_1(%arg0: i32, %arg1: i32) -> (i32, i32) {
    %c0_i32 = arith.constant 0 : i32
    %c0_i32_0 = arith.constant 0 : i32
    %c0_i32_1 = arith.constant 0 : i32
    return %c0_i32, %c0_i32_0 : i32, i32
  }
  func.func @transform_2(%arg0: i32, %arg1: i32) -> (i32, i32, i32) {
    %c0_i32 = arith.constant 0 : i32
    %c0_i32_0 = arith.constant 0 : i32
    return %arg1, %arg0, %c0_i32 : i32, i32, i32
  }
}

</mosaic_0001>

<llo_original>
// kernel: tpu_custom_call.1
$region0: #{tpu_custom_call.1}
  #allocation0 [shape = 'u32[]', space=smem, size = 0x4, offset = 0x4, fixed_abs, tag = 'smem constant byte address 0x4 - core index']
  #allocation1 [shape = 'u32[144,128]{1,0:T(1,128)}', space=vmem, size = 0x12000, scoped, tag = 'internal scratch']
  #allocation2 [shape = 'f32[8,128]{1,0:T(8,128)}', space=vmem, size = 0x1000, scoped, tag = 'scratch operand']
  #allocation3 [shape = 'f32[8,128]{1,0:T(8,128)}', space=vmem, size = 0x1000, scoped, tag = 'scratch operand']
  %s0 = inlined_call_operand.hbm [shape: f32[8,8,512], index: 0, kind: input, shape index: {}]
  %s1 = inlined_call_operand.hbm [shape: bf16[128,512], index: 1, kind: input, shape index: {}]
  %s2 = inlined_call_operand.hbm [shape: f32[8,8,128], index: 2, kind: output, shape index: {}]
  %s3 = sld [smem:[#allocation0]]
  $region30: #{tpu_custom_call.1} parent=0
    _
  %s5 = ssub.s32 1, %s3
  %s6 = scalar_select 0, %s5, %s3
  $region1: #{tpu_custom_call.1} parent=0
    #allocation4 [shape = 'u8[131072]{0}', space=vmem, size = 0x20000, scoped, tag = 'input window, operand 0, single buffered']
    #allocation5 [shape = 's32[1]{0}', space=sflag, size = 0x4, scoped, tag = 'scoped memory for tpu_custom_call.1']
    #allocation6 [shape = 's32[1]{0}', space=sflag, size = 0x4, scoped, tag = 'scoped memory for tpu_custom_call.1']
    #allocation7 [shape = 'u8[131072]{0}', space=vmem, size = 0x20000, scoped, tag = 'input window, operand 1, single buffered']
    #allocation8 [shape = 's32[1]{0}', space=sflag, size = 0x4, scoped, tag = 'scoped memory for tpu_custom_call.1']
    #allocation9 [shape = 'u8[32768]{0}', space=vmem, size = 0x8000, scoped, tag = 'output window, operand 0, single buffered']
    %7 = vsyncpa [#allocation5], 0
    %8 = vsyncpa [#allocation8], 0
    %9 = vsyncpa [#allocation6], 0
    // Predicated region
    $region2: #{tpu_custom_call.1} parent=1 // pred_check
      _
    $region3: #{tpu_custom_call.1} parent=1 // pred_check_branch
      %11 = sbr.rel (0) target = $region5
    $region4: #{tpu_custom_call.1} parent=1 // pred_region
      %s13 = ssub.s32 4096, 4096
      %14 = vsyncadd [#allocation5], %s13
      %s15 = sshll.u32 [#allocation4], 4
      %s16 = int_to_ptr.vmem [resolvable:$true] %s15
      %21 = dma.hbm_to_vmem [thread:$0]  %s0, 4096, %s16, [#allocation5], 512, 512, 32
    $region5: #{tpu_custom_call.1} parent=1 // pred_fallthru
      _
    // Predicated region
    $region6: #{tpu_custom_call.1} parent=1 // pred_check
      _
    $region7: #{tpu_custom_call.1} parent=1 // pred_check_branch
      %23 = sbr.rel (0) target = $region9
    $region8: #{tpu_custom_call.1} parent=1 // pred_region
      %s25 = ssub.s32 4096, 4096
      %26 = vsyncadd [#allocation8], %s25
      %s27 = sshll.u32 [#allocation7], 4
      %s28 = int_to_ptr.vmem [resolvable:$true] %s27
      %33 = dma.hbm_to_vmem [thread:$0]  %s1, 4096, %s28, [#allocation8], 256, 256, 16
    $region9: #{tpu_custom_call.1} parent=1 // pred_fallthru
      _
    // Predicated region
    $region10: #{tpu_custom_call.1} parent=1 // pred_check
      _
    $region11: #{tpu_custom_call.1} parent=1 // pred_check_branch
      %35 = sbr.rel (0) target = $region13
    $region12: #{tpu_custom_call.1} parent=1 // pred_region
      %36 = dma.done [#allocation5], 4096
    $region13: #{tpu_custom_call.1} parent=1 // pred_fallthru
      _
    // Predicated region
    $region14: #{tpu_custom_call.1} parent=1 // pred_check
      _
    $region15: #{tpu_custom_call.1} parent=1 // pred_check_branch
      %38 = sbr.rel (0) target = $region17
    $region16: #{tpu_custom_call.1} parent=1 // pred_region
      %39 = dma.done [#allocation8], 4096
    $region17: #{tpu_custom_call.1} parent=1 // pred_fallthru
      _
    %p41 = scmp.eq.s32.totalorder 0, 0
    // Predicated region
    $region18: #{tpu_custom_call.1} parent=1 // pred_check
      %p42 = pneg %p41
    $region19: #{tpu_custom_call.1} parent=1 // pred_check_branch
      %44 = sbr.rel (%p42) target = $region21
    $region20: #{tpu_custom_call.1} parent=1 // pred_region
      %45 = vst [vmem:[#allocation2] sm:$0xff] 0.0
      %46 = vst [vmem:[#allocation3] sm:$0xff] 0.0
    $region21: #{tpu_custom_call.1} parent=1 // pred_fallthru
      _
    %v47 = vld [vmem:[#allocation7] sm:$0xff]
    %v48 = vld [vmem:[#allocation7 + $0x8] sm:$0xff]
    %v49 = vld [vmem:[#allocation7 + $0x10] sm:$0xff]
    %v50 = vld [vmem:[#allocation7 + $0x18] sm:$0xff]
    %v51 = vld [vmem:[#allocation7 + $0x20] sm:$0xff]
    %v52 = vld [vmem:[#allocation7 + $0x28] sm:$0xff]
    %v53 = vld [vmem:[#allocation7 + $0x30] sm:$0xff]
    %v54 = vld [vmem:[#allocation7 + $0x38] sm:$0xff]
    %v55 = vld [vmem:[#allocation7 + $0x40] sm:$0xff]
    %v56 = vld [vmem:[#allocation7 + $0x48] sm:$0xff]
    %v57 = vld [vmem:[#allocation7 + $0x50] sm:$0xff]
    %v58 = vld [vmem:[#allocation7 + $0x58] sm:$0xff]
    %v59 = vld [vmem:[#allocation7 + $0x60] sm:$0xff]
    %v60 = vld [vmem:[#allocation7 + $0x68] sm:$0xff]
    %v61 = vld [vmem:[#allocation7 + $0x70] sm:$0xff]
    %v62 = vld [vmem:[#allocation7 + $0x78] sm:$0xff]
    %v63 = vld [vmem:[#allocation7 + $0x80] sm:$0xff]
    %v64 = vld [vmem:[#allocation7 + $0x88] sm:$0xff]
    %v65 = vld [vmem:[#allocation7 + $0x90] sm:$0xff]
    %v66 = vld [vmem:[#allocation7 + $0x98] sm:$0xff]
    %v67 = vld [vmem:[#allocation7 + $0xa0] sm:$0xff]
    %v68 = vld [vmem:[#allocation7 + $0xa8] sm:$0xff]
    %v69 = vld [vmem:[#allocation7 + $0xb0] sm:$0xff]
    %v70 = vld [vmem:[#allocation7 + $0xb8] sm:$0xff]
    %v71 = vld [vmem:[#allocation7 + $0xc0] sm:$0xff]
    %v72 = vld [vmem:[#allocation7 + $0xc8] sm:$0xff]
    %v73 = vld [vmem:[#allocation7 + $0xd0] sm:$0xff]
    %v74 = vld [vmem:[#allocation7 + $0xd8] sm:$0xff]
    %v75 = vld [vmem:[#allocation7 + $0xe0] sm:$0xff]
    %v76 = vld [vmem:[#allocation7 + $0xe8] sm:$0xff]
    %v77 = vld [vmem:[#allocation7 + $0xf0] sm:$0xff]
    %v78 = vld [vmem:[#allocation7 + $0xf8] sm:$0xff]
    %v79 = vld [vmem:[#allocation2] sm:$0xff]
    %v80 = vld [vmem:[#allocation3] sm:$0xff]
    %v81 = vld [vmem:[#allocation4] sm:$0xff]
    %v82 = vld [vmem:[#allocation4 + $0x8] sm:$0xff]
    %v83 = vld [vmem:[#allocation4 + $0x10] sm:$0xff]
    %v84 = vld [vmem:[#allocation4 + $0x18] sm:$0xff]
    %v85 = vpack.c.bf16 %v79, %v79
    %v118 = vunpack.c.l.b16 %v47
    %v119 = vunpack.c.h.b16 %v47
    %v120 = vunpack.c.l.b16 %v48
    %v121 = vunpack.c.h.b16 %v48
    %v122 = vunpack.c.l.b16 %v49
    %v123 = vunpack.c.h.b16 %v49
    %v124 = vunpack.c.l.b16 %v50
    %v125 = vunpack.c.h.b16 %v50
    %v126 = vunpack.c.l.b16 %v51
    %v127 = vunpack.c.h.b16 %v51
    %v128 = vunpack.c.l.b16 %v52
    %v129 = vunpack.c.h.b16 %v52
    %v130 = vunpack.c.l.b16 %v53
    %v131 = vunpack.c.h.b16 %v53
    %v132 = vunpack.c.l.b16 %v54
    %v133 = vunpack.c.h.b16 %v54
    %v134 = vunpack.c.l.b16 %v55
    %v135 = vunpack.c.h.b16 %v55
    %v136 = vunpack.c.l.b16 %v56
    %v137 = vunpack.c.h.b16 %v56
    %v138 = vunpack.c.l.b16 %v57
    %v139 = vunpack.c.h.b16 %v57
    %v140 = vunpack.c.l.b16 %v58
    %v141 = vunpack.c.h.b16 %v58
    %v142 = vunpack.c.l.b16 %v59
    %v143 = vunpack.c.h.b16 %v59
    %v144 = vunpack.c.l.b16 %v60
    %v145 = vunpack.c.h.b16 %v60
    %v146 = vunpack.c.l.b16 %v61
    %v147 = vunpack.c.h.b16 %v61
    %v148 = vunpack.c.l.b16 %v62
    %v149 = vunpack.c.h.b16 %v62
    %v150 = vunpack.c.l.b16 %v63
    %v151 = vunpack.c.h.b16 %v63
    %v152 = vunpack.c.l.b16 %v64
    %v153 = vunpack.c.h.b16 %v64
    %v154 = vunpack.c.l.b16 %v65
    %v155 = vunpack.c.h.b16 %v65
    %v156 = vunpack.c.l.b16 %v66
    %v157 = vunpack.c.h.b16 %v66
    %v158 = vunpack.c.l.b16 %v67
    %v159 = vunpack.c.h.b16 %v67
    %v160 = vunpack.c.l.b16 %v68
    %v161 = vunpack.c.h.b16 %v68
    %v162 = vunpack.c.l.b16 %v69
    %v163 = vunpack.c.h.b16 %v69
    %v164 = vunpack.c.l.b16 %v70
    %v165 = vunpack.c.h.b16 %v70
    %v166 = vunpack.c.l.b16 %v71
    %v167 = vunpack.c.h.b16 %v71
    %v168 = vunpack.c.l.b16 %v72
    %v169 = vunpack.c.h.b16 %v72
    %v170 = vunpack.c.l.b16 %v73
    %v171 = vunpack.c.h.b16 %v73
    %v172 = vunpack.c.l.b16 %v74
    %v173 = vunpack.c.h.b16 %v74
    %v174 = vunpack.c.l.b16 %v75
    %v175 = vunpack.c.h.b16 %v75
    %v176 = vunpack.c.l.b16 %v76
    %v177 = vunpack.c.h.b16 %v76
    %v178 = vunpack.c.l.b16 %v77
    %v179 = vunpack.c.h.b16 %v77
    %v180 = vunpack.c.l.b16 %v78
    %v181 = vunpack.c.h.b16 %v78
    %v182 = vpack.c.b16 %v122, %v118
    %v183 = vpack.c.b16 %v123, %v119
    %v184 = vpack.c.b16 %v124, %v120
    %v185 = vpack.c.b16 %v125, %v121
    %v186 = vpack.c.b16 %v130, %v126
    %v187 = vpack.c.b16 %v131, %v127
    %v188 = vpack.c.b16 %v132, %v128
    %v189 = vpack.c.b16 %v133, %v129
    %v190 = vpack.c.b16 %v138, %v134
    %v191 = vpack.c.b16 %v139, %v135
    %v192 = vpack.c.b16 %v140, %v136
    %v193 = vpack.c.b16 %v141, %v137
    %v194 = vpack.c.b16 %v146, %v142
    %v195 = vpack.c.b16 %v147, %v143
    %v196 = vpack.c.b16 %v148, %v144
    %v197 = vpack.c.b16 %v149, %v145
    %v198 = vpack.c.b16 %v154, %v150
    %v199 = vpack.c.b16 %v155, %v151
    %v200 = vpack.c.b16 %v156, %v152
    %v201 = vpack.c.b16 %v157, %v153
    %v202 = vpack.c.b16 %v162, %v158
    %v203 = vpack.c.b16 %v163, %v159
    %v204 = vpack.c.b16 %v164, %v160
    %v205 = vpack.c.b16 %v165, %v161
    %v206 = vpack.c.b16 %v170, %v166
    %v207 = vpack.c.b16 %v171, %v167
    %v208 = vpack.c.b16 %v172, %v168
    %v209 = vpack.c.b16 %v173, %v169
    %v210 = vpack.c.b16 %v178, %v174
    %v211 = vpack.c.b16 %v179, %v175
    %v212 = vpack.c.b16 %v180, %v176
    %v213 = vpack.c.b16 %v181, %v177
    %246 = vmatprep.subr.bf16.mxu0 %v183
    %247 = vmatpush1.bf16.msra.mxu0 %v182
    %248 = vmatprep.subr.bf16.mxu0 %v187
    %249 = vmatpush1.bf16.msra.mxu0 %v186
    %250 = vmatprep.subr.bf16.mxu0 %v191
    %251 = vmatpush1.bf16.msra.mxu0 %v190
    %252 = vmatprep.subr.bf16.mxu0 %v195
    %253 = vmatpush1.bf16.msra.mxu0 %v194
    %254 = vmatprep.subr.bf16.mxu0 %v199
    %255 = vmatpush1.bf16.msra.mxu0 %v198
    %256 = vmatprep.subr.bf16.mxu0 %v203
    %257 = vmatpush1.bf16.msra.mxu0 %v202
    %258 = vmatprep.subr.bf16.mxu0 %v207
    %259 = vmatpush1.bf16.msra.mxu0 %v206
    %260 = vmatprep.subr.bf16.mxu0 %v211
    %261 = vmatpush1.bf16.msra.mxu0 %v210
    %262 = vmatprep.subr.bf16.mxu0 0
    %263 = vmatpush1.bf16.msra.mxu0 0
    %264 = vmatprep.subr.bf16.mxu0 0
    %265 = vmatpush1.bf16.msra.mxu0 0
    %266 = vmatprep.subr.bf16.mxu0 0
    %267 = vmatpush1.bf16.msra.mxu0 0
    %268 = vmatprep.subr.bf16.mxu0 0
    %269 = vmatpush1.bf16.msra.mxu0 0
    %270 = vmatprep.subr.bf16.mxu0 0
    %271 = vmatpush1.bf16.msra.mxu0 0
    %272 = vmatprep.subr.bf16.mxu0 0
    %273 = vmatpush1.bf16.msra.mxu0 0
    %274 = vmatprep.subr.bf16.mxu0 0
    %275 = vmatpush1.bf16.msra.mxu0 0
    %276 = vmatprep.subr.bf16.mxu0 0
    %277 = vmatpush1.bf16.msra.mxu0 0
    %278 = vmatprep.mubr.bf16.mxu0 0
    %279 = vmatmul.mubr.bf16.gmra.mrb[0].mxu0 %v85
    %v280 = vpop.f32.mrb[0].mxu0
    %v281 = vadd.f32 0.0, %v280
    %v282 = vpop.f32.mrb[0].mxu0
    %v283 = vadd.f32 0.0, %v282
    %v284 = vpop.f32.mrb[0].mxu0
    %v285 = vpop.f32.mrb[0].mxu0
    %286 = vdwg.mxu0
    %287 = vmatprep.subr.bf16.mxu0 %v185
    %288 = vmatpush1.bf16.msra.mxu0 %v184
    %289 = vmatprep.subr.bf16.mxu0 %v189
    %290 = vmatpush1.bf16.msra.mxu0 %v188
    %291 = vmatprep.subr.bf16.mxu0 %v193
    %292 = vmatpush1.bf16.msra.mxu0 %v192
    %293 = vmatprep.subr.bf16.mxu0 %v197
    %294 = vmatpush1.bf16.msra.mxu0 %v196
    %295 = vmatprep.subr.bf16.mxu0 %v201
    %296 = vmatpush1.bf16.msra.mxu0 %v200
    %297 = vmatprep.subr.bf16.mxu0 %v205
    %298 = vmatpush1.bf16.msra.mxu0 %v204
    %299 = vmatprep.subr.bf16.mxu0 %v209
    %300 = vmatpush1.bf16.msra.mxu0 %v208
    %301 = vmatprep.subr.bf16.mxu0 %v213
    %302 = vmatpush1.bf16.msra.mxu0 %v212
    %303 = vmatprep.subr.bf16.mxu0 0
    %304 = vmatpush1.bf16.msra.mxu0 0
    %305 = vmatprep.subr.bf16.mxu0 0
    %306 = vmatpush1.bf16.msra.mxu0 0
    %307 = vmatprep.subr.bf16.mxu0 0
    %308 = vmatpush1.bf16.msra.mxu0 0
    %309 = vmatprep.subr.bf16.mxu0 0
    %310 = vmatpush1.bf16.msra.mxu0 0
    %311 = vmatprep.subr.bf16.mxu0 0
    %312 = vmatpush1.bf16.msra.mxu0 0
    %313 = vmatprep.subr.bf16.mxu0 0
    %314 = vmatpush1.bf16.msra.mxu0 0
    %315 = vmatprep.subr.bf16.mxu0 0
    %316 = vmatpush1.bf16.msra.mxu0 0
    %317 = vmatprep.subr.bf16.mxu0 0
    %318 = vmatpush1.bf16.msra.mxu0 0
    %319 = vmatprep.mubr.bf16.mxu0 0
    %320 = vmatmul.mubr.bf16.gmra.mrb[0].mxu0 %v85
    %v321 = vpop.f32.mrb[0].mxu0
    %v322 = vadd.f32 0.0, %v321
    %v323 = vpop.f32.mrb[0].mxu0
    %v324 = vadd.f32 0.0, %v323
    %v325 = vpop.f32.mrb[0].mxu0
    %v326 = vpop.f32.mrb[0].mxu0
    %327 = vdwg.mxu0
    %v328 = vadd.f32 %v81, %v281
    %v329 = vadd.f32 %v82, %v283
    %v330 = vadd.f32 %v83, %v322
    %v331 = vadd.f32 %v84, %v324
    %v332 = vxor.u32 %v328, 2147483648
    %v333 = vxor.u32 %v329, 2147483648
    %v334 = vxor.u32 %v330, 2147483648
    %v335 = vmul.f32 %v332, 1.442695
    %v336 = vpow.pop %v335
    %v337 = vmul.f32 %v333, 1.442695
    %v338 = vpow.pop %v337
    %v339 = vmul.f32 %v334, 1.442695
    %v340 = vpow.pop %v339
    %v341 = vadd.f32 %v336, 1.0
    %v342 = vadd.f32 %v338, 1.0
    %v343 = vadd.f32 %v340, 1.0
    %v344 = vrcp.pop %v341
    %v345 = vmul.f32 1.0, %v344
    %v346 = vrcp.pop %v342
    %v347 = vmul.f32 1.0, %v346
    %v348 = vrcp.pop %v343
    %v349 = vmul.f32 1.0, %v348
    %v350 = vtanh.pop %v331
    %v351 = vmul.f32 %v345, %v350
    %v352 = vmul.f32 %v347, %v80
    %v353 = vadd.f32 %v351, %v352
    %v354 = vtanh.pop %v353
    %v355 = vmul.f32 %v349, %v354
    %356 = vst [vmem:[#allocation9] sm:$0xff] %v355
    %s357 = scalar_lea.vmem [#allocation4], 32
    %v358 = vld [vmem:[%s357] sm:$0xff]
    %v359 = vld [vmem:[%s357 + $0x8] sm:$0xff]
    %v360 = vld [vmem:[%s357 + $0x10] sm:$0xff]
    %v361 = vld [vmem:[%s357 + $0x18] sm:$0xff]
    %v362 = vpack.c.bf16 %v355, %v355
    %363 = vmatprep.subr.bf16.mxu0 %v183
    %364 = vmatpush1.bf16.msra.mxu0 %v182
    %365 = vmatprep.subr.bf16.mxu0 %v187
    %366 = vmatpush1.bf16.msra.mxu0 %v186
    %367 = vmatprep.subr.bf16.mxu0 %v191
    %368 = vmatpush1.bf16.msra.mxu0 %v190
    %369 = vmatprep.subr.bf16.mxu0 %v195
    %370 = vmatpush1.bf16.msra.mxu0 %v194
    %371 = vmatprep.subr.bf16.mxu0 %v199
    %372 = vmatpush1.bf16.msra.mxu0 %v198
    %373 = vmatprep.subr.bf16.mxu0 %v203
    %374 = vmatpush1.bf16.msra.mxu0 %v202
    %375 = vmatprep.subr.bf16.mxu0 %v207
    %376 = vmatpush1.bf16.msra.mxu0 %v206
    %377 = vmatprep.subr.bf16.mxu0 %v211
    %378 = vmatpush1.bf16.msra.mxu0 %v210
    %379 = vmatprep.subr.bf16.mxu0 0
    %380 = vmatpush1.bf16.msra.mxu0 0
    %381 = vmatprep.subr.bf16.mxu0 0
    %382 = vmatpush1.bf16.msra.mxu0 0
    %383 = vmatprep.subr.bf16.mxu0 0
    %384 = vmatpush1.bf16.msra.mxu0 0
    %385 = vmatprep.subr.bf16.mxu0 0
    %386 = vmatpush1.bf16.msra.mxu0 0
    %387 = vmatprep.subr.bf16.mxu0 0
    %388 = vmatpush1.bf16.msra.mxu0 0
    %389 = vmatprep.subr.bf16.mxu0 0
    %390 = vmatpush1.bf16.msra.mxu0 0
    %391 = vmatprep.subr.bf16.mxu0 0
    %392 = vmatpush1.bf16.msra.mxu0 0
    %393 = vmatprep.subr.bf16.mxu0 0
    %394 = vmatpush1.bf16.msra.mxu0 0
    %395 = vmatprep.mubr.bf16.mxu0 0
    %396 = vmatmul.mubr.bf16.gmra.mrb[0].mxu0 %v362
    %v397 = vpop.f32.mrb[0].mxu0
    %v398 = vadd.f32 0.0, %v397
    %v399 = vpop.f32.mrb[0].mxu0
    %v400 = vadd.f32 0.0, %v399
    %v401 = vpop.f32.mrb[0].mxu0
    %v402 = vpop.f32.mrb[0].mxu0
    %403 = vdwg.mxu0
    %404 = vmatprep.subr.bf16.mxu0 %v185
    %405 = vmatpush1.bf16.msra.mxu0 %v184
    %406 = vmatprep.subr.bf16.mxu0 %v189
    %407 = vmatpush1.bf16.msra.mxu0 %v188
    %408 = vmatprep.subr.bf16.mxu0 %v193
    %409 = vmatpush1.bf16.msra.mxu0 %v192
    %410 = vmatprep.subr.bf16.mxu0 %v197
    %411 = vmatpush1.bf16.msra.mxu0 %v196
    %412 = vmatprep.subr.bf16.mxu0 %v201
    %413 = vmatpush1.bf16.msra.mxu0 %v200
    %414 = vmatprep.subr.bf16.mxu0 %v205
    %415 = vmatpush1.bf16.msra.mxu0 %v204
    %416 = vmatprep.subr.bf16.mxu0 %v209
    %417 = vmatpush1.bf16.msra.mxu0 %v208
    %418 = vmatprep.subr.bf16.mxu0 %v213
    %419 = vmatpush1.bf16.msra.mxu0 %v212
    %420 = vmatprep.subr.bf16.mxu0 0
    %421 = vmatpush1.bf16.msra.mxu0 0
    %422 = vmatprep.subr.bf16.mxu0 0
    %423 = vmatpush1.bf16.msra.mxu0 0
    %424 = vmatprep.subr.bf16.mxu0 0
    %425 = vmatpush1.bf16.msra.mxu0 0
    %426 = vmatprep.subr.bf16.mxu0 0
    %427 = vmatpush1.bf16.msra.mxu0 0
    %428 = vmatprep.subr.bf16.mxu0 0
    %429 = vmatpush1.bf16.msra.mxu0 0
    %430 = vmatprep.subr.bf16.mxu0 0
    %431 = vmatpush1.bf16.msra.mxu0 0
    %432 = vmatprep.subr.bf16.mxu0 0
    %433 = vmatpush1.bf16.msra.mxu0 0
    %434 = vmatprep.subr.bf16.mxu0 0
    %435 = vmatpush1.bf16.msra.mxu0 0
    %436 = vmatprep.mubr.bf16.mxu0 0
    %437 = vmatmul.mubr.bf16.gmra.mrb[0].mxu0 %v362
    %v438 = vpop.f32.mrb[0].mxu0
    %v439 = vadd.f32 0.0, %v438
    %v440 = vpop.f32.mrb[0].mxu0
    %v441 = vadd.f32 0.0, %v440
    %v442 = vpop.f32.mrb[0].mxu0
    %v443 = vpop.f32.mrb[0].mxu0
    %444 = vdwg.mxu0
    %v445 = vadd.f32 %v358, %v398
    %v446 = vadd.f32 %v359, %v400
    %v447 = vadd.f32 %v360, %v439
    %v448 = vadd.f32 %v361, %v441
    %v449 = vxor.u32 %v445, 2147483648
    %v450 = vxor.u32 %v446, 2147483648
    %v451 = vxor.u32 %v447, 2147483648
    %v452 = vmul.f32 %v449, 1.442695
    %v453 = vpow.pop %v452
    %v454 = vmul.f32 %v450, 1.442695
    %v455 = vpow.pop %v454
    %v456 = vmul.f32 %v451, 1.442695
    %v457 = vpow.pop %v456
    %v458 = vadd.f32 %v453, 1.0
    %v459 = vadd.f32 %v455, 1.0
    %v460 = vadd.f32 %v457, 1.0
    %v461 = vrcp.pop %v458
    %v462 = vmul.f32 1.0, %v461
    %v463 = vrcp.pop %v459
    %v464 = vmul.f32 1.0, %v463
    %v465 = vrcp.pop %v460
    %v466 = vmul.f32 1.0, %v465
    %v467 = vtanh.pop %v448
    %v468 = vmul.f32 %v462, %v467
    %v469 = vmul.f32 %v464, %v353
    %v470 = vadd.f32 %v468, %v469
    %v471 = vtanh.pop %v470
    %v472 = vmul.f32 %v466, %v471
    %s473 = scalar_lea.vmem [#allocation9], 8
    %474 = vst [vmem:[%s473] sm:$0xff] %v472
    %s475 = scalar_lea.vmem [#allocation4], 64
    %v476 = vld [vmem:[%s475] sm:$0xff]
    %v477 = vld [vmem:[%s475 + $0x8] sm:$0xff]
    %v478 = vld [vmem:[%s475 + $0x10] sm:$0xff]
    %v479 = vld [vmem:[%s475 + $0x18] sm:$0xff]
    %v480 = vpack.c.bf16 %v472, %v472
    %481 = vmatprep.subr.bf16.mxu0 %v183
    %482 = vmatpush1.bf16.msra.mxu0 %v182
    %483 = vmatprep.subr.bf16.mxu0 %v187
    %484 = vmatpush1.bf16.msra.mxu0 %v186
    %485 = vmatprep.subr.bf16.mxu0 %v191
    %486 = vmatpush1.bf16.msra.mxu0 %v190
    %487 = vmatprep.subr.bf16.mxu0 %v195
    %488 = vmatpush1.bf16.msra.mxu0 %v194
    %489 = vmatprep.subr.bf16.mxu0 %v199
    %490 = vmatpush1.bf16.msra.mxu0 %v198
    %491 = vmatprep.subr.bf16.mxu0 %v203
    %492 = vmatpush1.bf16.msra.mxu0 %v202
    %493 = vmatprep.subr.bf16.mxu0 %v207
    %494 = vmatpush1.bf16.msra.mxu0 %v206
    %495 = vmatprep.subr.bf16.mxu0 %v211
    %496 = vmatpush1.bf16.msra.mxu0 %v210
    %497 = vmatprep.subr.bf16.mxu0 0
    %498 = vmatpush1.bf16.msra.mxu0 0
    %499 = vmatprep.subr.bf16.mxu0 0
    %500 = vmatpush1.bf16.msra.mxu0 0
    %501 = vmatprep.subr.bf16.mxu0 0
    %502 = vmatpush1.bf16.msra.mxu0 0
    %503 = vmatprep.subr.bf16.mxu0 0
    %504 = vmatpush1.bf16.msra.mxu0 0
    %505 = vmatprep.subr.bf16.mxu0 0
    %506 = vmatpush1.bf16.msra.mxu0 0
    %507 = vmatprep.subr.bf16.mxu0 0
    %508 = vmatpush1.bf16.msra.mxu0 0
    %509 = vmatprep.subr.bf16.mxu0 0
    %510 = vmatpush1.bf16.msra.mxu0 0
    %511 = vmatprep.subr.bf16.mxu0 0
    %512 = vmatpush1.bf16.msra.mxu0 0
    %513 = vmatprep.mubr.bf16.mxu0 0
    %514 = vmatmul.mubr.bf16.gmra.mrb[0].mxu0 %v480
    %v515 = vpop.f32.mrb[0].mxu0
    %v516 = vadd.f32 0.0, %v515
    %v517 = vpop.f32.mrb[0].mxu0
    %v518 = vadd.f32 0.0, %v517
    %v519 = vpop.f32.mrb[0].mxu0
    %v520 = vpop.f32.mrb[0].mxu0
    %521 = vdwg.mxu0
    %522 = vmatprep.subr.bf16.mxu0 %v185
    %523 = vmatpush1.bf16.msra.mxu0 %v184
    %524 = vmatprep.subr.bf16.mxu0 %v189
    %525 = vmatpush1.bf16.msra.mxu0 %v188
    %526 = vmatprep.subr.bf16.mxu0 %v193
    %527 = vmatpush1.bf16.msra.mxu0 %v192
    %528 = vmatprep.subr.bf16.mxu0 %v197
    %529 = vmatpush1.bf16.msra.mxu0 %v196
    %530 = vmatprep.subr.bf16.mxu0 %v201
    %531 = vmatpush1.bf16.msra.mxu0 %v200
    %532 = vmatprep.subr.bf16.mxu0 %v205
    %533 = vmatpush1.bf16.msra.mxu0 %v204
    %534 = vmatprep.subr.bf16.mxu0 %v209
    %535 = vmatpush1.bf16.msra.mxu0 %v208
    %536 = vmatprep.subr.bf16.mxu0 %v213
    %537 = vmatpush1.bf16.msra.mxu0 %v212
    %538 = vmatprep.subr.bf16.mxu0 0
    %539 = vmatpush1.bf16.msra.mxu0 0
    %540 = vmatprep.subr.bf16.mxu0 0
    %541 = vmatpush1.bf16.msra.mxu0 0
    %542 = vmatprep.subr.bf16.mxu0 0
    %543 = vmatpush1.bf16.msra.mxu0 0
    %544 = vmatprep.subr.bf16.mxu0 0
    %545 = vmatpush1.bf16.msra.mxu0 0
    %546 = vmatprep.subr.bf16.mxu0 0
    %547 = vmatpush1.bf16.msra.mxu0 0
    %548 = vmatprep.subr.bf16.mxu0 0
    %549 = vmatpush1.bf16.msra.mxu0 0
    %550 = vmatprep.subr.bf16.mxu0 0
    %551 = vmatpush1.bf16.msra.mxu0 0
    %552 = vmatprep.subr.bf16.mxu0 0
    %553 = vmatpush1.bf16.msra.mxu0 0
    %554 = vmatprep.mubr.bf16.mxu0 0
    %555 = vmatmul.mubr.bf16.gmra.mrb[0].mxu0 %v480
    %v556 = vpop.f32.mrb[0].mxu0
    %v557 = vadd.f32 0.0, %v556
    %v558 = vpop.f32.mrb[0].mxu0
    %v559 = vadd.f32 0.0, %v558
    %v560 = vpop.f32.mrb[0].mxu0
    %v561 = vpop.f32.mrb[0].mxu0
    %562 = vdwg.mxu0
    %v563 = vadd.f32 %v476, %v516
    %v564 = vadd.f32 %v477, %v518
    %v565 = vadd.f32 %v478, %v557
    %v566 = vadd.f32 %v479, %v559
    %v567 = vxor.u32 %v563, 2147483648
    %v568 = vxor.u32 %v564, 2147483648
    %v569 = vxor.u32 %v565, 2147483648
    %v570 = vmul.f32 %v567, 1.442695
    %v571 = vpow.pop %v570
    %v572 = vmul.f32 %v568, 1.442695
    %v573 = vpow.pop %v572
    %v574 = vmul.f32 %v569, 1.442695
    %v575 = vpow.pop %v574
    %v576 = vadd.f32 %v571, 1.0
    %v577 = vadd.f32 %v573, 1.0
    %v578 = vadd.f32 %v575, 1.0
    %v579 = vrcp.pop %v576
    %v580 = vmul.f32 1.0, %v579
    %v581 = vrcp.pop %v577
    %v582 = vmul.f32 1.0, %v581
    %v583 = vrcp.pop %v578
    %v584 = vmul.f32 1.0, %v583
    %v585 = vtanh.pop %v566
    %v586 = vmul.f32 %v580, %v585
    %v587 = vmul.f32 %v582, %v470
    %v588 = vadd.f32 %v586, %v587
    %v589 = vtanh.pop %v588
    %v590 = vmul.f32 %v584, %v589
    %s591 = scalar_lea.vmem [#allocation9], 16
    %592 = vst [vmem:[%s591] sm:$0xff] %v590
    %s593 = scalar_lea.vmem [#allocation4], 96
    %v594 = vld [vmem:[%s593] sm:$0xff]
    %v595 = vld [vmem:[%s593 + $0x8] sm:$0xff]
    %v596 = vld [vmem:[%s593 + $0x10] sm:$0xff]
    %v597 = vld [vmem:[%s593 + $0x18] sm:$0xff]
    %v598 = vpack.c.bf16 %v590, %v590
    %599 = vmatprep.subr.bf16.mxu0 %v183
    %600 = vmatpush1.bf16.msra.mxu0 %v182
    %601 = vmatprep.subr.bf16.mxu0 %v187
    %602 = vmatpush1.bf16.msra.mxu0 %v186
    %603 = vmatprep.subr.bf16.mxu0 %v191
    %604 = vmatpush1.bf16.msra.mxu0 %v190
    %605 = vmatprep.subr.bf16.mxu0 %v195
    %606 = vmatpush1.bf16.msra.mxu0 %v194
    %607 = vmatprep.subr.bf16.mxu0 %v199
    %608 = vmatpush1.bf16.msra.mxu0 %v198
    %609 = vmatprep.subr.bf16.mxu0 %v203
    %610 = vmatpush1.bf16.msra.mxu0 %v202
    %611 = vmatprep.subr.bf16.mxu0 %v207
    %612 = vmatpush1.bf16.msra.mxu0 %v206
    %613 = vmatprep.subr.bf16.mxu0 %v211
    %614 = vmatpush1.bf16.msra.mxu0 %v210
    %615 = vmatprep.subr.bf16.mxu0 0
    %616 = vmatpush1.bf16.msra.mxu0 0
    %617 = vmatprep.subr.bf16.mxu0 0
    %618 = vmatpush1.bf16.msra.mxu0 0
    %619 = vmatprep.subr.bf16.mxu0 0
    %620 = vmatpush1.bf16.msra.mxu0 0
    %621 = vmatprep.subr.bf16.mxu0 0
    %622 = vmatpush1.bf16.msra.mxu0 0
    %623 = vmatprep.subr.bf16.mxu0 0
    %624 = vmatpush1.bf16.msra.mxu0 0
    %625 = vmatprep.subr.bf16.mxu0 0
    %626 = vmatpush1.bf16.msra.mxu0 0
    %627 = vmatprep.subr.bf16.mxu0 0
    %628 = vmatpush1.bf16.msra.mxu0 0
    %629 = vmatprep.subr.bf16.mxu0 0
    %630 = vmatpush1.bf16.msra.mxu0 0
    %631 = vmatprep.mubr.bf16.mxu0 0
    %632 = vmatmul.mubr.bf16.gmra.mrb[0].mxu0 %v598
    %v633 = vpop.f32.mrb[0].mxu0
    %v634 = vadd.f32 0.0, %v633
    %v635 = vpop.f32.mrb[0].mxu0
    %v636 = vadd.f32 0.0, %v635
    %v637 = vpop.f32.mrb[0].mxu0
    %v638 = vpop.f32.mrb[0].mxu0
    %639 = vdwg.mxu0
    %640 = vmatprep.subr.bf16.mxu0 %v185
    %641 = vmatpush1.bf16.msra.mxu0 %v184
    %642 = vmatprep.subr.bf16.mxu0 %v189
    %643 = vmatpush1.bf16.msra.mxu0 %v188
    %644 = vmatprep.subr.bf16.mxu0 %v193
    %645 = vmatpush1.bf16.msra.mxu0 %v192
    %646 = vmatprep.subr.bf16.mxu0 %v197
    %647 = vmatpush1.bf16.msra.mxu0 %v196
    %648 = vmatprep.subr.bf16.mxu0 %v201
    %649 = vmatpush1.bf16.msra.mxu0 %v200
    %650 = vmatprep.subr.bf16.mxu0 %v205
    %651 = vmatpush1.bf16.msra.mxu0 %v204
    %652 = vmatprep.subr.bf16.mxu0 %v209
    %653 = vmatpush1.bf16.msra.mxu0 %v208
    %654 = vmatprep.subr.bf16.mxu0 %v213
    %655 = vmatpush1.bf16.msra.mxu0 %v212
    %656 = vmatprep.subr.bf16.mxu0 0
    %657 = vmatpush1.bf16.msra.mxu0 0
    %658 = vmatprep.subr.bf16.mxu0 0
    %659 = vmatpush1.bf16.msra.mxu0 0
    %660 = vmatprep.subr.bf16.mxu0 0
    %661 = vmatpush1.bf16.msra.mxu0 0
    %662 = vmatprep.subr.bf16.mxu0 0
    %663 = vmatpush1.bf16.msra.mxu0 0
    %664 = vmatprep.subr.bf16.mxu0 0
    %665 = vmatpush1.bf16.msra.mxu0 0
    %666 = vmatprep.subr.bf16.mxu0 0
    %667 = vmatpush1.bf16.msra.mxu0 0
    %668 = vmatprep.subr.bf16.mxu0 0
    %669 = vmatpush1.bf16.msra.mxu0 0
    %670 = vmatprep.subr.bf16.mxu0 0
    %671 = vmatpush1.bf16.msra.mxu0 0
    %672 = vmatprep.mubr.bf16.mxu0 0
    %673 = vmatmul.mubr.bf16.gmra.mrb[0].mxu0 %v598
    %v674 = vpop.f32.mrb[0].mxu0
    %v675 = vadd.f32 0.0, %v674
    %v676 = vpop.f32.mrb[0].mxu0
    %v677 = vadd.f32 0.0, %v676
    %v678 = vpop.f32.mrb[0].mxu0
    %v679 = vpop.f32.mrb[0].mxu0
    %680 = vdwg.mxu0
    %v681 = vadd.f32 %v594, %v634
    %v682 = vadd.f32 %v595, %v636
    %v683 = vadd.f32 %v596, %v675
    %v684 = vadd.f32 %v597, %v677
    %v685 = vxor.u32 %v681, 2147483648
    %v686 = vxor.u32 %v682, 2147483648
    %v687 = vxor.u32 %v683, 2147483648
    %v688 = vmul.f32 %v685, 1.442695
    %v689 = vpow.pop %v688
    %v690 = vmul.f32 %v686, 1.442695
    %v691 = vpow.pop %v690
    %v692 = vmul.f32 %v687, 1.442695
    %v693 = vpow.pop %v692
    %v694 = vadd.f32 %v689, 1.0
    %v695 = vadd.f32 %v691, 1.0
    %v696 = vadd.f32 %v693, 1.0
    %v697 = vrcp.pop %v694
    %v698 = vmul.f32 1.0, %v697
    %v699 = vrcp.pop %v695
    %v700 = vmul.f32 1.0, %v699
    %v701 = vrcp.pop %v696
    %v702 = vmul.f32 1.0, %v701
    %v703 = vtanh.pop %v684
    %v704 = vmul.f32 %v698, %v703
    %v705 = vmul.f32 %v700, %v588
    %v706 = vadd.f32 %v704, %v705
    %v707 = vtanh.pop %v706
    %v708 = vmul.f32 %v702, %v707
    %s709 = scalar_lea.vmem [#allocation9], 24
    %710 = vst [vmem:[%s709] sm:$0xff] %v708
    %s711 = scalar_lea.vmem [#allocation4], 128
    %v712 = vld [vmem:[%s711] sm:$0xff]
    %v713 = vld [vmem:[%s711 + $0x8] sm:$0xff]
    %v714 = vld [vmem:[%s711 + $0x10] sm:$0xff]
    %v715 = vld [vmem:[%s711 + $0x18] sm:$0xff]
    %v716 = vpack.c.bf16 %v708, %v708
    %717 = vmatprep.subr.bf16.mxu0 %v183
    %718 = vmatpush1.bf16.msra.mxu0 %v182
    %719 = vmatprep.subr.bf16.mxu0 %v187
    %720 = vmatpush1.bf16.msra.mxu0 %v186
    %721 = vmatprep.subr.bf16.mxu0 %v191
    %722 = vmatpush1.bf16.msra.mxu0 %v190
    %723 = vmatprep.subr.bf16.mxu0 %v195
    %724 = vmatpush1.bf16.msra.mxu0 %v194
    %725 = vmatprep.subr.bf16.mxu0 %v199
    %726 = vmatpush1.bf16.msra.mxu0 %v198
    %727 = vmatprep.subr.bf16.mxu0 %v203
    %728 = vmatpush1.bf16.msra.mxu0 %v202
    %729 = vmatprep.subr.bf16.mxu0 %v207
    %730 = vmatpush1.bf16.msra.mxu0 %v206
    %731 = vmatprep.subr.bf16.mxu0 %v211
    %732 = vmatpush1.bf16.msra.mxu0 %v210
    %733 = vmatprep.subr.bf16.mxu0 0
    %734 = vmatpush1.bf16.msra.mxu0 0
    %735 = vmatprep.subr.bf16.mxu0 0
    %736 = vmatpush1.bf16.msra.mxu0 0
    %737 = vmatprep.subr.bf16.mxu0 0
    %738 = vmatpush1.bf16.msra.mxu0 0
    %739 = vmatprep.subr.bf16.mxu0 0
    %740 = vmatpush1.bf16.msra.mxu0 0
    %741 = vmatprep.subr.bf16.mxu0 0
    %742 = vmatpush1.bf16.msra.mxu0 0
    %743 = vmatprep.subr.bf16.mxu0 0
    %744 = vmatpush1.bf16.msra.mxu0 0
    %745 = vmatprep.subr.bf16.mxu0 0
    %746 = vmatpush1.bf16.msra.mxu0 0
    %747 = vmatprep.subr.bf16.mxu0 0
    %748 = vmatpush1.bf16.msra.mxu0 0
    %749 = vmatprep.mubr.bf16.mxu0 0
    %750 = vmatmul.mubr.bf16.gmra.mrb[0].mxu0 %v716
    %v751 = vpop.f32.mrb[0].mxu0
    %v752 = vadd.f32 0.0, %v751
    %v753 = vpop.f32.mrb[0].mxu0
    %v754 = vadd.f32 0.0, %v753
    %v755 = vpop.f32.mrb[0].mxu0
    %v756 = vpop.f32.mrb[0].mxu0
    %757 = vdwg.mxu0
    %758 = vmatprep.subr.bf16.mxu0 %v185
    %759 = vmatpush1.bf16.msra.mxu0 %v184
    %760 = vmatprep.subr.bf16.mxu0 %v189
    %761 = vmatpush1.bf16.msra.mxu0 %v188
    %762 = vmatprep.subr.bf16.mxu0 %v193
    %763 = vmatpush1.bf16.msra.mxu0 %v192
    %764 = vmatprep.subr.bf16.mxu0 %v197
    %765 = vmatpush1.bf16.msra.mxu0 %v196
    %766 = vmatprep.subr.bf16.mxu0 %v201
    %767 = vmatpush1.bf16.msra.mxu0 %v200
    %768 = vmatprep.subr.bf16.mxu0 %v205
    %769 = vmatpush1.bf16.msra.mxu0 %v204
    %770 = vmatprep.subr.bf16.mxu0 %v209
    %771 = vmatpush1.bf16.msra.mxu0 %v208
    %772 = vmatprep.subr.bf16.mxu0 %v213
    %773 = vmatpush1.bf16.msra.mxu0 %v212
    %774 = vmatprep.subr.bf16.mxu0 0
    %775 = vmatpush1.bf16.msra.mxu0 0
    %776 = vmatprep.subr.bf16.mxu0 0
    %777 = vmatpush1.bf16.msra.mxu0 0
    %778 = vmatprep.subr.bf16.mxu0 0
    %779 = vmatpush1.bf16.msra.mxu0 0
    %780 = vmatprep.subr.bf16.mxu0 0
    %781 = vmatpush1.bf16.msra.mxu0 0
    %782 = vmatprep.subr.bf16.mxu0 0
    %783 = vmatpush1.bf16.msra.mxu0 0
    %784 = vmatprep.subr.bf16.mxu0 0
    %785 = vmatpush1.bf16.msra.mxu0 0
    %786 = vmatprep.subr.bf16.mxu0 0
    %787 = vmatpush1.bf16.msra.mxu0 0
    %788 = vmatprep.subr.bf16.mxu0 0
    %789 = vmatpush1.bf16.msra.mxu0 0
    %790 = vmatprep.mubr.bf16.mxu0 0
    %791 = vmatmul.mubr.bf16.gmra.mrb[0].mxu0 %v716
    %v792 = vpop.f32.mrb[0].mxu0
    %v793 = vadd.f32 0.0, %v792
    %v794 = vpop.f32.mrb[0].mxu0
    %v795 = vadd.f32 0.0, %v794
    %v796 = vpop.f32.mrb[0].mxu0
    %v797 = vpop.f32.mrb[0].mxu0
    %798 = vdwg.mxu0
    %v799 = vadd.f32 %v712, %v752
    %v800 = vadd.f32 %v713, %v754
    %v801 = vadd.f32 %v714, %v793
    %v802 = vadd.f32 %v715, %v795
    %v803 = vxor.u32 %v799, 2147483648
    %v804 = vxor.u32 %v800, 2147483648
    %v805 = vxor.u32 %v801, 2147483648
    %v806 = vmul.f32 %v803, 1.442695
    %v807 = vpow.pop %v806
    %v808 = vmul.f32 %v804, 1.442695
    %v809 = vpow.pop %v808
    %v810 = vmul.f32 %v805, 1.442695
    %v811 = vpow.pop %v810
    %v812 = vadd.f32 %v807, 1.0
    %v813 = vadd.f32 %v809, 1.0
    %v814 = vadd.f32 %v811, 1.0
    %v815 = vrcp.pop %v812
    %v816 = vmul.f32 1.0, %v815
    %v817 = vrcp.pop %v813
    %v818 = vmul.f32 1.0, %v817
    %v819 = vrcp.pop %v814
    %v820 = vmul.f32 1.0, %v819
    %v821 = vtanh.pop %v802
    %v822 = vmul.f32 %v816, %v821
    %v823 = vmul.f32 %v818, %v706
    %v824 = vadd.f32 %v822, %v823
    %v825 = vtanh.pop %v824
    %v826 = vmul.f32 %v820, %v825
    %s827 = scalar_lea.vmem [#allocation9], 32
    %828 = vst [vmem:[%s827] sm:$0xff] %v826
    %s829 = scalar_lea.vmem [#allocation4], 160
    %v830 = vld [vmem:[%s829] sm:$0xff]
    %v831 = vld [vmem:[%s829 + $0x8] sm:$0xff]
    %v832 = vld [vmem:[%s829 + $0x10] sm:$0xff]
    %v833 = vld [vmem:[%s829 + $0x18] sm:$0xff]
    %v834 = vpack.c.bf16 %v826, %v826
    %835 = vmatprep.subr.bf16.mxu0 %v183
    %836 = vmatpush1.bf16.msra.mxu0 %v182
    %837 = vmatprep.subr.bf16.mxu0 %v187
    %838 = vmatpush1.bf16.msra.mxu0 %v186
    %839 = vmatprep.subr.bf16.mxu0 %v191
    %840 = vmatpush1.bf16.msra.mxu0 %v190
    %841 = vmatprep.subr.bf16.mxu0 %v195
    %842 = vmatpush1.bf16.msra.mxu0 %v194
    %843 = vmatprep.subr.bf16.mxu0 %v199
    %844 = vmatpush1.bf16.msra.mxu0 %v198
    %845 = vmatprep.subr.bf16.mxu0 %v203
    %846 = vmatpush1.bf16.msra.mxu0 %v202
    %847 = vmatprep.subr.bf16.mxu0 %v207
    %848 = vmatpush1.bf16.msra.mxu0 %v206
    %849 = vmatprep.subr.bf16.mxu0 %v211
    %850 = vmatpush1.bf16.msra.mxu0 %v210
    %851 = vmatprep.subr.bf16.mxu0 0
    %852 = vmatpush1.bf16.msra.mxu0 0
    %853 = vmatprep.subr.bf16.mxu0 0
    %854 = vmatpush1.bf16.msra.mxu0 0
    %855 = vmatprep.subr.bf16.mxu0 0
    %856 = vmatpush1.bf16.msra.mxu0 0
    %857 = vmatprep.subr.bf16.mxu0 0
    %858 = vmatpush1.bf16.msra.mxu0 0
    %859 = vmatprep.subr.bf16.mxu0 0
    %860 = vmatpush1.bf16.msra.mxu0 0
    %861 = vmatprep.subr.bf16.mxu0 0
    %862 = vmatpush1.bf16.msra.mxu0 0
    %863 = vmatprep.subr.bf16.mxu0 0
    %864 = vmatpush1.bf16.msra.mxu0 0
    %865 = vmatprep.subr.bf16.mxu0 0
    %866 = vmatpush1.bf16.msra.mxu0 0
    %867 = vmatprep.mubr.bf16.mxu0 0
    %868 = vmatmul.mubr.bf16.gmra.mrb[0].mxu0 %v834
    %v869 = vpop.f32.mrb[0].mxu0
    %v870 = vadd.f32 0.0, %v869
    %v871 = vpop.f32.mrb[0].mxu0
    %v872 = vadd.f32 0.0, %v871
    %v873 = vpop.f32.mrb[0].mxu0
    %v874 = vpop.f32.mrb[0].mxu0
    %875 = vdwg.mxu0
    %876 = vmatprep.subr.bf16.mxu0 %v185
    %877 = vmatpush1.bf16.msra.mxu0 %v184
    %878 = vmatprep.subr.bf16.mxu0 %v189
    %879 = vmatpush1.bf16.msra.mxu0 %v188
    %880 = vmatprep.subr.bf16.mxu0 %v193
    %881 = vmatpush1.bf16.msra.mxu0 %v192
    %882 = vmatprep.subr.bf16.mxu0 %v197
    %883 = vmatpush1.bf16.msra.mxu0 %v196
    %884 = vmatprep.subr.bf16.mxu0 %v201
    %885 = vmatpush1.bf16.msra.mxu0 %v200
    %886 = vmatprep.subr.bf16.mxu0 %v205
    %887 = vmatpush1.bf16.msra.mxu0 %v204
    %888 = vmatprep.subr.bf16.mxu0 %v209
    %889 = vmatpush1.bf16.msra.mxu0 %v208
    %890 = vmatprep.subr.bf16.mxu0 %v213
    %891 = vmatpush1.bf16.msra.mxu0 %v212
    %892 = vmatprep.subr.bf16.mxu0 0
    %893 = vmatpush1.bf16.msra.mxu0 0
    %894 = vmatprep.subr.bf16.mxu0 0
    %895 = vmatpush1.bf16.msra.mxu0 0
    %896 = vmatprep.subr.bf16.mxu0 0
    %897 = vmatpush1.bf16.msra.mxu0 0
    %898 = vmatprep.subr.bf16.mxu0 0
    %899 = vmatpush1.bf16.msra.mxu0 0
    %900 = vmatprep.subr.bf16.mxu0 0
    %901 = vmatpush1.bf16.msra.mxu0 0
    %902 = vmatprep.subr.bf16.mxu0 0
    %903 = vmatpush1.bf16.msra.mxu0 0
    %904 = vmatprep.subr.bf16.mxu0 0
    %905 = vmatpush1.bf16.msra.mxu0 0
    %906 = vmatprep.subr.bf16.mxu0 0
    %907 = vmatpush1.bf16.msra.mxu0 0
    %908 = vmatprep.mubr.bf16.mxu0 0
    %909 = vmatmul.mubr.bf16.gmra.mrb[0].mxu0 %v834
    %v910 = vpop.f32.mrb[0].mxu0
    %v911 = vadd.f32 0.0, %v910
    %v912 = vpop.f32.mrb[0].mxu0
    %v913 = vadd.f32 0.0, %v912
    %v914 = vpop.f32.mrb[0].mxu0
    %v915 = vpop.f32.mrb[0].mxu0
    %916 = vdwg.mxu0
    %v917 = vadd.f32 %v830, %v870
    %v918 = vadd.f32 %v831, %v872
    %v919 = vadd.f32 %v832, %v911
    %v920 = vadd.f32 %v833, %v913
    %v921 = vxor.u32 %v917, 2147483648
    %v922 = vxor.u32 %v918, 2147483648
    %v923 = vxor.u32 %v919, 2147483648
    %v924 = vmul.f32 %v921, 1.442695
    %v925 = vpow.pop %v924
    %v926 = vmul.f32 %v922, 1.442695
    %v927 = vpow.pop %v926
    %v928 = vmul.f32 %v923, 1.442695
    %v929 = vpow.pop %v928
    %v930 = vadd.f32 %v925, 1.0
    %v931 = vadd.f32 %v927, 1.0
    %v932 = vadd.f32 %v929, 1.0
    %v933 = vrcp.pop %v930
    %v934 = vmul.f32 1.0, %v933
    %v935 = vrcp.pop %v931
    %v936 = vmul.f32 1.0, %v935
    %v937 = vrcp.pop %v932
    %v938 = vmul.f32 1.0, %v937
    %v939 = vtanh.pop %v920
    %v940 = vmul.f32 %v934, %v939
    %v941 = vmul.f32 %v936, %v824
    %v942 = vadd.f32 %v940, %v941
    %v943 = vtanh.pop %v942
    %v944 = vmul.f32 %v938, %v943
    %s945 = scalar_lea.vmem [#allocation9], 40
    %946 = vst [vmem:[%s945] sm:$0xff] %v944
    %s947 = scalar_lea.vmem [#allocation4], 192
    %v948 = vld [vmem:[%s947] sm:$0xff]
    %v949 = vld [vmem:[%s947 + $0x8] sm:$0xff]
    %v950 = vld [vmem:[%s947 + $0x10] sm:$0xff]
    %v951 = vld [vmem:[%s947 + $0x18] sm:$0xff]
    %v952 = vpack.c.bf16 %v944, %v944
    %953 = vmatprep.subr.bf16.mxu0 %v183
    %954 = vmatpush1.bf16.msra.mxu0 %v182
    %955 = vmatprep.subr.bf16.mxu0 %v187
    %956 = vmatpush1.bf16.msra.mxu0 %v186
    %957 = vmatprep.subr.bf16.mxu0 %v191
    %958 = vmatpush1.bf16.msra.mxu0 %v190
    %959 = vmatprep.subr.bf16.mxu0 %v195
    %960 = vmatpush1.bf16.msra.mxu0 %v194
    %961 = vmatprep.subr.bf16.mxu0 %v199
    %962 = vmatpush1.bf16.msra.mxu0 %v198
    %963 = vmatprep.subr.bf16.mxu0 %v203
    %964 = vmatpush1.bf16.msra.mxu0 %v202
    %965 = vmatprep.subr.bf16.mxu0 %v207
    %966 = vmatpush1.bf16.msra.mxu0 %v206
    %967 = vmatprep.subr.bf16.mxu0 %v211
    %968 = vmatpush1.bf16.msra.mxu0 %v210
    %969 = vmatprep.subr.bf16.mxu0 0
    %970 = vmatpush1.bf16.msra.mxu0 0
    %971 = vmatprep.subr.bf16.mxu0 0
    %972 = vmatpush1.bf16.msra.mxu0 0
    %973 = vmatprep.subr.bf16.mxu0 0
    %974 = vmatpush1.bf16.msra.mxu0 0
    %975 = vmatprep.subr.bf16.mxu0 0
    %976 = vmatpush1.bf16.msra.mxu0 0
    %977 = vmatprep.subr.bf16.mxu0 0
    %978 = vmatpush1.bf16.msra.mxu0 0
    %979 = vmatprep.subr.bf16.mxu0 0
    %980 = vmatpush1.bf16.msra.mxu0 0
    %981 = vmatprep.subr.bf16.mxu0 0
    %982 = vmatpush1.bf16.msra.mxu0 0
    %983 = vmatprep.subr.bf16.mxu0 0
    %984 = vmatpush1.bf16.msra.mxu0 0
    %985 = vmatprep.mubr.bf16.mxu0 0
    %986 = vmatmul.mubr.bf16.gmra.mrb[0].mxu0 %v952
    %v987 = vpop.f32.mrb[0].mxu0
    %v988 = vadd.f32 0.0, %v987
    %v989 = vpop.f32.mrb[0].mxu0
    %v990 = vadd.f32 0.0, %v989
    %v991 = vpop.f32.mrb[0].mxu0
    %v992 = vpop.f32.mrb[0].mxu0
    %993 = vdwg.mxu0
    %994 = vmatprep.subr.bf16.mxu0 %v185
    %995 = vmatpush1.bf16.msra.mxu0 %v184
    %996 = vmatprep.subr.bf16.mxu0 %v189
    %997 = vmatpush1.bf16.msra.mxu0 %v188
    %998 = vmatprep.subr.bf16.mxu0 %v193
    %999 = vmatpush1.bf16.msra.mxu0 %v192
    %1000 = vmatprep.subr.bf16.mxu0 %v197
    %1001 = vmatpush1.bf16.msra.mxu0 %v196
    %1002 = vmatprep.subr.bf16.mxu0 %v201
    %1003 = vmatpush1.bf16.msra.mxu0 %v200
    %1004 = vmatprep.subr.bf16.mxu0 %v205
    %1005 = vmatpush1.bf16.msra.mxu0 %v204
    %1006 = vmatprep.subr.bf16.mxu0 %v209
    %1007 = vmatpush1.bf16.msra.mxu0 %v208
    %1008 = vmatprep.subr.bf16.mxu0 %v213
    %1009 = vmatpush1.bf16.msra.mxu0 %v212
    %1010 = vmatprep.subr.bf16.mxu0 0
    %1011 = vmatpush1.bf16.msra.mxu0 0
    %1012 = vmatprep.subr.bf16.mxu0 0
    %1013 = vmatpush1.bf16.msra.mxu0 0
    %1014 = vmatprep.subr.bf16.mxu0 0
    %1015 = vmatpush1.bf16.msra.mxu0 0
    %1016 = vmatprep.subr.bf16.mxu0 0
    %1017 = vmatpush1.bf16.msra.mxu0 0
    %1018 = vmatprep.subr.bf16.mxu0 0
    %1019 = vmatpush1.bf16.msra.mxu0 0
    %1020 = vmatprep.subr.bf16.mxu0 0
    %1021 = vmatpush1.bf16.msra.mxu0 0
    %1022 = vmatprep.subr.bf16.mxu0 0
    %1023 = vmatpush1.bf16.msra.mxu0 0
    %1024 = vmatprep.subr.bf16.mxu0 0
    %1025 = vmatpush1.bf16.msra.mxu0 0
    %1026 = vmatprep.mubr.bf16.mxu0 0
    %1027 = vmatmul.mubr.bf16.gmra.mrb[0].mxu0 %v952
    %v1028 = vpop.f32.mrb[0].mxu0
    %v1029 = vadd.f32 0.0, %v1028
    %v1030 = vpop.f32.mrb[0].mxu0
    %v1031 = vadd.f32 0.0, %v1030
    %v1032 = vpop.f32.mrb[0].mxu0
    %v1033 = vpop.f32.mrb[0].mxu0
    %1034 = vdwg.mxu0
    %v1035 = vadd.f32 %v948, %v988
    %v1036 = vadd.f32 %v949, %v990
    %v1037 = vadd.f32 %v950, %v1029
    %v1038 = vadd.f32 %v951, %v1031
    %v1039 = vxor.u32 %v1035, 2147483648
    %v1040 = vxor.u32 %v1036, 2147483648
    %v1041 = vxor.u32 %v1037, 2147483648
    %v1042 = vmul.f32 %v1039, 1.442695
    %v1043 = vpow.pop %v1042
    %v1044 = vmul.f32 %v1040, 1.442695
    %v1045 = vpow.pop %v1044
    %v1046 = vmul.f32 %v1041, 1.442695
    %v1047 = vpow.pop %v1046
    %v1048 = vadd.f32 %v1043, 1.0
    %v1049 = vadd.f32 %v1045, 1.0
    %v1050 = vadd.f32 %v1047, 1.0
    %v1051 = vrcp.pop %v1048
    %v1052 = vmul.f32 1.0, %v1051
    %v1053 = vrcp.pop %v1049
    %v1054 = vmul.f32 1.0, %v1053
    %v1055 = vrcp.pop %v1050
    %v1056 = vmul.f32 1.0, %v1055
    %v1057 = vtanh.pop %v1038
    %v1058 = vmul.f32 %v1052, %v1057
    %v1059 = vmul.f32 %v1054, %v942
    %v1060 = vadd.f32 %v1058, %v1059
    %v1061 = vtanh.pop %v1060
    %v1062 = vmul.f32 %v1056, %v1061
    %s1063 = scalar_lea.vmem [#allocation9], 48
    %1064 = vst [vmem:[%s1063] sm:$0xff] %v1062
    %s1065 = scalar_lea.vmem [#allocation4], 224
    %v1066 = vld [vmem:[%s1065] sm:$0xff]
    %v1067 = vld [vmem:[%s1065 + $0x8] sm:$0xff]
    %v1068 = vld [vmem:[%s1065 + $0x10] sm:$0xff]
    %v1069 = vld [vmem:[%s1065 + $0x18] sm:$0xff]
    %v1070 = vpack.c.bf16 %v1062, %v1062
    %1071 = vmatprep.subr.bf16.mxu0 %v183
    %1072 = vmatpush1.bf16.msra.mxu0 %v182
    %1073 = vmatprep.subr.bf16.mxu0 %v187
    %1074 = vmatpush1.bf16.msra.mxu0 %v186
    %1075 = vmatprep.subr.bf16.mxu0 %v191
    %1076 = vmatpush1.bf16.msra.mxu0 %v190
    %1077 = vmatprep.subr.bf16.mxu0 %v195
    %1078 = vmatpush1.bf16.msra.mxu0 %v194
    %1079 = vmatprep.subr.bf16.mxu0 %v199
    %1080 = vmatpush1.bf16.msra.mxu0 %v198
    %1081 = vmatprep.subr.bf16.mxu0 %v203
    %1082 = vmatpush1.bf16.msra.mxu0 %v202
    %1083 = vmatprep.subr.bf16.mxu0 %v207
    %1084 = vmatpush1.bf16.msra.mxu0 %v206
    %1085 = vmatprep.subr.bf16.mxu0 %v211
    %1086 = vmatpush1.bf16.msra.mxu0 %v210
    %1087 = vmatprep.subr.bf16.mxu0 0
    %1088 = vmatpush1.bf16.msra.mxu0 0
    %1089 = vmatprep.subr.bf16.mxu0 0
    %1090 = vmatpush1.bf16.msra.mxu0 0
    %1091 = vmatprep.subr.bf16.mxu0 0
    %1092 = vmatpush1.bf16.msra.mxu0 0
    %1093 = vmatprep.subr.bf16.mxu0 0
    %1094 = vmatpush1.bf16.msra.mxu0 0
    %1095 = vmatprep.subr.bf16.mxu0 0
    %1096 = vmatpush1.bf16.msra.mxu0 0
    %1097 = vmatprep.subr.bf16.mxu0 0
    %1098 = vmatpush1.bf16.msra.mxu0 0
    %1099 = vmatprep.subr.bf16.mxu0 0
    %1100 = vmatpush1.bf16.msra.mxu0 0
    %1101 = vmatprep.subr.bf16.mxu0 0
    %1102 = vmatpush1.bf16.msra.mxu0 0
    %1103 = vmatprep.mubr.bf16.mxu0 0
    %1104 = vmatmul.mubr.bf16.gmra.mrb[0].mxu0 %v1070
    %v1105 = vpop.f32.mrb[0].mxu0
    %v1106 = vadd.f32 0.0, %v1105
    %v1107 = vpop.f32.mrb[0].mxu0
    %v1108 = vadd.f32 0.0, %v1107
    %v1109 = vpop.f32.mrb[0].mxu0
    %v1110 = vpop.f32.mrb[0].mxu0
    %1111 = vdwg.mxu0
    %1112 = vmatprep.subr.bf16.mxu0 %v185
    %1113 = vmatpush1.bf16.msra.mxu0 %v184
    %1114 = vmatprep.subr.bf16.mxu0 %v189
    %1115 = vmatpush1.bf16.msra.mxu0 %v188
    %1116 = vmatprep.subr.bf16.mxu0 %v193
    %1117 = vmatpush1.bf16.msra.mxu0 %v192
    %1118 = vmatprep.subr.bf16.mxu0 %v197
    %1119 = vmatpush1.bf16.msra.mxu0 %v196
    %1120 = vmatprep.subr.bf16.mxu0 %v201
    %1121 = vmatpush1.bf16.msra.mxu0 %v200
    %1122 = vmatprep.subr.bf16.mxu0 %v205
    %1123 = vmatpush1.bf16.msra.mxu0 %v204
    %1124 = vmatprep.subr.bf16.mxu0 %v209
    %1125 = vmatpush1.bf16.msra.mxu0 %v208
    %1126 = vmatprep.subr.bf16.mxu0 %v213
    %1127 = vmatpush1.bf16.msra.mxu0 %v212
    %1128 = vmatprep.subr.bf16.mxu0 0
    %1129 = vmatpush1.bf16.msra.mxu0 0
    %1130 = vmatprep.subr.bf16.mxu0 0
    %1131 = vmatpush1.bf16.msra.mxu0 0
    %1132 = vmatprep.subr.bf16.mxu0 0
    %1133 = vmatpush1.bf16.msra.mxu0 0
    %1134 = vmatprep.subr.bf16.mxu0 0
    %1135 = vmatpush1.bf16.msra.mxu0 0
    %1136 = vmatprep.subr.bf16.mxu0 0
    %1137 = vmatpush1.bf16.msra.mxu0 0
    %1138 = vmatprep.subr.bf16.mxu0 0
    %1139 = vmatpush1.bf16.msra.mxu0 0
    %1140 = vmatprep.subr.bf16.mxu0 0
    %1141 = vmatpush1.bf16.msra.mxu0 0
    %1142 = vmatprep.subr.bf16.mxu0 0
    %1143 = vmatpush1.bf16.msra.mxu0 0
    %1144 = vmatprep.mubr.bf16.mxu0 0
    %1145 = vmatmul.mubr.bf16.gmra.mrb[0].mxu0 %v1070
    %v1146 = vpop.f32.mrb[0].mxu0
    %v1147 = vadd.f32 0.0, %v1146
    %v1148 = vpop.f32.mrb[0].mxu0
    %v1149 = vadd.f32 0.0, %v1148
    %v1150 = vpop.f32.mrb[0].mxu0
    %v1151 = vpop.f32.mrb[0].mxu0
    %1152 = vdwg.mxu0
    %v1153 = vadd.f32 %v1066, %v1106
    %v1154 = vadd.f32 %v1067, %v1108
    %v1155 = vadd.f32 %v1068, %v1147
    %v1156 = vadd.f32 %v1069, %v1149
    %v1157 = vxor.u32 %v1153, 2147483648
    %v1158 = vxor.u32 %v1154, 2147483648
    %v1159 = vxor.u32 %v1155, 2147483648
    %v1160 = vmul.f32 %v1157, 1.442695
    %v1161 = vpow.pop %v1160
    %v1162 = vmul.f32 %v1158, 1.442695
    %v1163 = vpow.pop %v1162
    %v1164 = vmul.f32 %v1159, 1.442695
    %v1165 = vpow.pop %v1164
    %v1166 = vadd.f32 %v1161, 1.0
    %v1167 = vadd.f32 %v1163, 1.0
    %v1168 = vadd.f32 %v1165, 1.0
    %v1169 = vrcp.pop %v1166
    %v1170 = vmul.f32 1.0, %v1169
    %v1171 = vrcp.pop %v1167
    %v1172 = vmul.f32 1.0, %v1171
    %v1173 = vrcp.pop %v1168
    %v1174 = vmul.f32 1.0, %v1173
    %v1175 = vtanh.pop %v1156
    %v1176 = vmul.f32 %v1170, %v1175
    %v1177 = vmul.f32 %v1172, %v1060
    %v1178 = vadd.f32 %v1176, %v1177
    %v1179 = vtanh.pop %v1178
    %v1180 = vmul.f32 %v1174, %v1179
    %s1181 = scalar_lea.vmem [#allocation9], 56
    %1182 = vst [vmem:[%s1181] sm:$0xff] %v1180
    %1183 = vst [vmem:[#allocation2] sm:$0xff] %v1180
    %1184 = vst [vmem:[#allocation3] sm:$0xff] %v1178
    // Predicated region
    $region22: #{tpu_custom_call.1} parent=1 // pred_check
      _
    $region23: #{tpu_custom_call.1} parent=1 // pred_check_branch
      %1186 = sbr.rel (0) target = $region25
    $region24: #{tpu_custom_call.1} parent=1 // pred_region
      %s1188 = ssub.s32 1024, 1024
      %1189 = vsyncadd [#allocation6], %s1188
      %s1190 = sshll.u32 [#allocation9], 4
      %s1191 = int_to_ptr.vmem [resolvable:$true] %s1190
      %1196 = dma.vmem_to_hbm [thread:$0]  %s1191, 1024, %s2, [#allocation6], 128, 128, 8
    $region25: #{tpu_custom_call.1} parent=1 // pred_fallthru
      _
    // Predicated region
    $region26: #{tpu_custom_call.1} parent=1 // pred_check
      _
    $region27: #{tpu_custom_call.1} parent=1 // pred_check_branch
      %1198 = sbr.rel (0) target = $region29
    $region28: #{tpu_custom_call.1} parent=1 // pred_region
      %1199 = dma.done [#allocation6], 1024
    $region29: #{tpu_custom_call.1} parent=1 // pred_fallthru
      _
    %1200 = vsyncpa [#allocation5], 1
    %1201 = vsyncpa [#allocation8], 1
    %1202 = vsyncpa [#allocation6], 1

</llo_original>
